<compile_context>
chip_gen: v5e
topology: v5e:2x2
jax: 0.10.0
libtpu: 0.0.40
codegen_flags: <defaults>
</compile_context>

<pallas_src>
import jax
import jax.numpy as jnp
from jax.experimental import pallas as pl
from jax.experimental.pallas import tpu as pltpu


def _lfq_kernel(z_ref, zw_ref, cbt_ref, maskw_ref, qw_ref, idx_ref, pp_ref, st_ref):
    tn, _ = z_ref.shape

    z = z_ref[...].astype(jnp.float32)                        # (TN, D)

    # ---- sign quantization, stored through the lane-dense (rows, 128) view ----
    zw = zw_ref[...].astype(jnp.float32)
    qw_ref[...] = jnp.where(zw > 0, 1.0, -1.0).astype(qw_ref.dtype)

    # ---- binary-encoded indices: MXU dot of sign bits with a power-of-two column ----
    bits = (z > 0).astype(jnp.float32)                        # (TN, D)
    idx_wide = jnp.dot(bits, maskw_ref[...],
                       preferred_element_type=jnp.float32)    # (TN, 128); col 0 = index
    idx_ref[...] = idx_wide[:, 0:1].astype(jnp.int32)

    # ---- commitment SSE partial:  ||z - sign(z)||^2 == sum (|z| - 1)^2  (unmasked) ----
    a = jnp.abs(z) - 1.0
    sse = jnp.sum(jnp.sum(a * a, axis=-1, keepdims=True),
                  axis=0, keepdims=True)                       # (1, 1)

    # ---- similarity (1/temperature already folded into the codebook) ----
    s = jnp.dot(z, cbt_ref[...], preferred_element_type=jnp.float32)   # (TN, C)

    # ---- softmax statistics: one exact per-row reciprocal, no per-element divide ----
    m = jnp.max(s, axis=-1, keepdims=True)
    e = jnp.exp(s - m)
    zs = jnp.sum(e, axis=-1, keepdims=True)
    inv = pl.reciprocal(zs)
    p = e * inv                                                # (TN, C)

    # ---- per-sample entropy via the LSE identity, summed over the tile ----
    pdot = jnp.sum(p * s, axis=-1, keepdims=True)              # (TN, 1)
    h = m + jnp.log(zs) - pdot                                 # (TN, 1)
    hsum = jnp.sum(h, axis=0, keepdims=True)                   # (1, 1)

    # ---- prob column sums on the MXU: ones-row (8,TN) @ p (TN,C); row 0 = col sums ----
    r8 = jax.lax.broadcasted_iota(jnp.int32, (8, tn), 0)
    ones_row = jnp.where(r8 == 0, 1.0, 0.0)                    # (8, TN), f32
    pp_ref[...] = jnp.dot(ones_row, p, preferred_element_type=jnp.float32)

    # ---- scalar partials packed lane-aligned in (8, 128): [0,0]=SSE, [0,1]=sum(H) ----
    rr = jax.lax.broadcasted_iota(jnp.int32, (8, 128), 0)
    cc = jax.lax.broadcasted_iota(jnp.int32, (8, 128), 1)
    st_ref[...] = (jnp.where((rr == 0) & (cc == 0), sse, 0.0)
                   + jnp.where((rr == 0) & (cc == 1), hsum, 0.0))


def lfq_forward(z, *, temperature=1.0, commitment_cost=0.25,
                entropy_loss_weight=0.1, diversity_gamma=1.0, block_n=2048):
    """Pallas implementation of LFQLayer.forward. z: (N, D) float. Returns
    (quantized (N, D), loss scalar, indices (N,) int32)."""
    N, D = z.shape
    assert 1 <= D <= 24, "indices are computed in f32; require D <= 24"
    C = 2 ** D

    # Token tile: multiple of `unit`, where unit*D % 1024 == 0 so the wide-view block
    # row count stays a multiple of 8 (the (8, 128) tiling constraint).
    unit = 128
    while (unit * D) % 1024 != 0:
        unit += 128
    block_n = max(unit, (int(block_n) // unit) * unit)
    block_n = min(block_n, ((N + unit - 1) // unit) * unit)
    n_pad = ((N + block_n - 1) // block_n) * block_n
    num_tiles = n_pad // block_n
    w_rows = block_n * D // 128                                 # wide rows per tile

    zp = z.astype(jnp.float32)
    if n_pad != N:
        zp = jnp.pad(zp, ((0, n_pad - N), (0, 0)))              # padded rows are exact 0
    z_wide = zp.reshape(n_pad * D // 128, 128)                  # free row-major reshape

    # Non-learnable buffers (mirrors __init__); fold 1/temperature into the codebook.
    mask_i = 2 ** jnp.arange(D - 1, -1, -1, dtype=jnp.int32)    # (D,)
    codes = jnp.arange(C, dtype=jnp.int32)
    bits_tab = ((codes[:, None] & mask_i[None, :]) != 0).astype(jnp.float32)   # (C, D)
    cbt = jnp.transpose(bits_tab * 2.0 - 1.0) * (1.0 / float(temperature))     # (D, C)
    maskw = jnp.zeros((D, 128), jnp.float32).at[:, 0].set(mask_i.astype(jnp.float32))

    cost = pl.CostEstimate(
        flops=2 * n_pad * D * (C + 128) + 16 * n_pad * C + 6 * n_pad * C,
        transcendentals=n_pad * C + 2 * n_pad,
        bytes_accessed=4 * (3 * n_pad * D + D * C + n_pad
                            + num_tiles * 8 * (C + 128)),
    )

    qw, idx, pp, st = pl.pallas_call(
        _lfq_kernel,
        out_shape=(
            jax.ShapeDtypeStruct((n_pad * D // 128, 128), jnp.float32),  # quantized (wide)
            jax.ShapeDtypeStruct((n_pad, 1), jnp.int32),                 # indices
            jax.ShapeDtypeStruct((num_tiles * 8, C), jnp.float32),       # prob col partials
            jax.ShapeDtypeStruct((num_tiles * 8, 128), jnp.float32),     # SSE / sum(H)
        ),
        grid=(num_tiles,),
        in_specs=[
            pl.BlockSpec((block_n, D), lambda i: (i, 0)),    # z (narrow, for matmuls)
            pl.BlockSpec((w_rows, 128), lambda i: (i, 0)),   # z (lane-dense view)
            pl.BlockSpec((D, C), lambda i: (0, 0)),          # codebook^T / temperature
            pl.BlockSpec((D, 128), lambda i: (0, 0)),        # power-of-two mask column
        ],
        out_specs=(
            pl.BlockSpec((w_rows, 128), lambda i: (i, 0)),
            pl.BlockSpec((block_n, 1), lambda i: (i, 0)),
            pl.BlockSpec((8, C), lambda i: (i, 0)),
            pl.BlockSpec((8, 128), lambda i: (i, 0)),
        ),
        compiler_params=pltpu.CompilerParams(
            dimension_semantics=("parallel",),
            vmem_limit_bytes=32 * 1024 * 1024),
        cost_estimate=cost,
    )(zp, z_wide, cbt, maskw)

    quantized = qw.reshape(n_pad, D)[:N].astype(z.dtype)
    indices = idx[:N, 0]

    # Padded rows are exactly zero, so they contribute known constants to every partial;
    # subtract them analytically instead of masking inside the kernel.
    pad_rows = n_pad - N
    total_sse = jnp.sum(st[:, 0]) - pad_rows * float(D)
    total_h = jnp.sum(st[:, 1]) - pad_rows * jnp.log(jnp.float32(C))
    col_sums = jnp.sum(pp, axis=0) - pad_rows / float(C)

    commit_loss = commitment_cost * total_sse / (N * D)
    per_sample_entropy = total_h / N
    avg_prob = col_sums / N
    batch_entropy = jnp.sum(-avg_prob * jnp.log(jnp.maximum(avg_prob, 1e-8)))
    loss = commit_loss + entropy_loss_weight * (
        per_sample_entropy - diversity_gamma * batch_entropy)
    return quantized, loss, indices


def _lfq_reference(z, *, temperature=1.0, commitment_cost=0.25,
                   entropy_loss_weight=0.1, diversity_gamma=1.0):
    """Pure-JAX reference mirroring the PyTorch forward, for verification."""
    N, D = z.shape
    C = 2 ** D
    mask = 2 ** jnp.arange(D - 1, -1, -1, dtype=jnp.int32)
    codes = jnp.arange(C, dtype=jnp.int32)
    bits = ((codes[:, None] & mask[None, :]) != 0).astype(jnp.float32)
    codebook = bits * 2.0 - 1.0
    quant = jnp.where(z > 0, 1.0, -1.0)
    idx = jnp.sum((z > 0).astype(jnp.int32) * mask[None, :], axis=-1)
    commit = commitment_cost * jnp.mean((z - quant) ** 2)
    sim = z @ codebook.T / temperature
    prob = jax.nn.softmax(sim, axis=-1)
    pse = jnp.mean(jnp.sum(-prob * jnp.log(jnp.maximum(prob, 1e-8)), axis=-1))
    avg_prob = jnp.mean(prob, axis=0)
    be = jnp.sum(-avg_prob * jnp.log(jnp.maximum(avg_prob, 1e-8)))
    loss = commit + entropy_loss_weight * (pse - diversity_gamma * be)
    return quant, loss, idx


if __name__ == "__main__":
    key = jax.random.PRNGKey(0)
    D = 8                                   # embedding_dim=8 -> codebook of 256 codes
    cases = (
        (512, 128),     # multi-tile, no padding
        (500, 128),     # multi-tile, padded last tile (exercises analytic correction)
        (300, None),    # default tile size, single padded tile
    )
    for case, (n, bn) in enumerate(cases):
        z = jax.random.normal(jax.random.fold_in(key, case), (n, D), dtype=jnp.float32)

        if bn is None:
            q, loss, idx = lfq_forward(z)
        else:
            q, loss, idx = lfq_forward(z, block_n=bn)
        jax.block_until_ready((q, loss, idx))

        q_ref, loss_ref, idx_ref = _lfq_reference(z)
        assert q.shape == (n, D) and idx.shape == (n,)
        assert jnp.array_equal(q, q_ref), "quantized mismatch"
        assert jnp.array_equal(idx, idx_ref), "indices mismatch"
        assert jnp.allclose(loss, loss_ref, rtol=2e-4, atol=2e-5), \
            f"loss mismatch: {loss} vs {loss_ref}"

    print("KERNEL_OK")
</pallas_src>

<mosaic_0001>
module attributes {stable_mosaic.version = 11 : i64} {
  func.func @_lfq_kernel(%arg0: i32, %arg1: memref<128x8xf32, #tpu.memory_space<vmem>>, %arg2: memref<8x128xf32, #tpu.memory_space<vmem>>, %arg3: memref<8x256xf32, #tpu.memory_space<vmem>>, %arg4: memref<8x128xf32, #tpu.memory_space<vmem>>, %arg5: memref<8x128xf32, #tpu.memory_space<vmem>>, %arg6: memref<128x1xi32, #tpu.memory_space<vmem>>, %arg7: memref<8x256xf32, #tpu.memory_space<vmem>>, %arg8: memref<8x128xf32, #tpu.memory_space<vmem>>) attributes {dimension_semantics = [#tpu.dimension_semantics<parallel>], iteration_bounds = array<i64: 4>, scalar_prefetch = 0 : i64, scratch_operands = 0 : i64, tpu.core_type = #tpu.core_type<tc>, window_params = [{transform_indices = @transform_0, window_bounds = array<i64: 128, 8>}, {transform_indices = @transform_1, window_bounds = array<i64: 8, 128>}, {pipeline_mode = #tpu.pipeline_mode<synchronous>, transform_indices = @transform_2, window_bounds = array<i64: 8, 256>}, {pipeline_mode = #tpu.pipeline_mode<synchronous>, transform_indices = @transform_3, window_bounds = array<i64: 8, 128>}, {transform_indices = @transform_4, window_bounds = array<i64: 8, 128>}, {transform_indices = @transform_5, window_bounds = array<i64: 128, 1>}, {transform_indices = @transform_6, window_bounds = array<i64: 8, 256>}, {transform_indices = @transform_7, window_bounds = array<i64: 8, 128>}]} {
    %c0 = arith.constant 0 : index
    %c0_0 = arith.constant 0 : index
    %0 = vector.load %arg1[%c0, %c0_0] : memref<128x8xf32, #tpu.memory_space<vmem>>, vector<128x8xf32>
    %c0_1 = arith.constant 0 : index
    %c0_2 = arith.constant 0 : index
    %1 = vector.load %arg2[%c0_1, %c0_2] : memref<8x128xf32, #tpu.memory_space<vmem>>, vector<8x128xf32>
    %cst = arith.constant 0.000000e+00 : f32
    %2 = vector.broadcast %cst : f32 to vector<8x128xf32>
    %3 = arith.cmpf ogt, %1, %2 : vector<8x128xf32>
    %cst_3 = arith.constant 1.000000e+00 : f32
    %cst_4 = arith.constant -1.000000e+00 : f32
    %4 = vector.broadcast %cst_3 : f32 to vector<8x128xf32>
    %5 = vector.broadcast %cst_4 : f32 to vector<8x128xf32>
    %6 = arith.select %3, %4, %5 : vector<8x128xi1>, vector<8x128xf32>
    %c0_5 = arith.constant 0 : index
    %c0_6 = arith.constant 0 : index
    %7 = vector.load %arg5[%c0_5, %c0_6] : memref<8x128xf32, #tpu.memory_space<vmem>>, vector<8x128xf32>
    tpu.vector_store %arg5[%c0_5, %c0_6], %6 {strides = array<i32>} : memref<8x128xf32, #tpu.memory_space<vmem>>, vector<8x128xf32>,
    %cst_7 = arith.constant 0.000000e+00 : f32
    %8 = vector.broadcast %cst_7 : f32 to vector<128x8xf32>
    %9 = arith.cmpf ogt, %0, %8 : vector<128x8xf32>
    %10 = arith.extui %9 : vector<128x8xi1> to vector<128x8xi32>
    %11 = arith.sitofp %10 : vector<128x8xi32> to vector<128x8xf32>
    %c0_8 = arith.constant 0 : index
    %c0_9 = arith.constant 0 : index
    %12 = vector.load %arg4[%c0_8, %c0_9] : memref<8x128xf32, #tpu.memory_space<vmem>>, vector<8x128xf32>
    %cst_10 = arith.constant dense<0.000000e+00> : vector<128x128xf32>
    %13 = tpu.matmul %11, %12, %cst_10 {dimension_numbers = #tpu.dot_dimension_numbers<[1], [0], [0], [1], [0, 0, 1, 1], [], []>} : vector<128x8xf32>, vector<8x128xf32>, vector<128x128xf32> -> vector<128x128xf32>
    %14 = vector.extract_strided_slice %13 {offsets = [0, 0], sizes = [128, 1], strides = [1, 1]} : vector<128x128xf32> to vector<128x1xf32>
    %15 = arith.fptosi %14 : vector<128x1xf32> to vector<128x1xi32>
    %c0_11 = arith.constant 0 : index
    %c0_12 = arith.constant 0 : index
    %16 = vector.load %arg6[%c0_11, %c0_12] : memref<128x1xi32, #tpu.memory_space<vmem>>, vector<128x1xi32>
    tpu.vector_store %arg6[%c0_11, %c0_12], %15 {strides = array<i32>} : memref<128x1xi32, #tpu.memory_space<vmem>>, vector<128x1xi32>,
    %17 = math.absf %0 : vector<128x8xf32>
    %cst_13 = arith.constant 1.000000e+00 : f32
    %18 = vector.broadcast %cst_13 : f32 to vector<128x8xf32>
    %19 = arith.subf %17, %18 : vector<128x8xf32>
    %20 = arith.mulf %19, %19 : vector<128x8xf32>
    %cst_14 = arith.constant dense<0.000000e+00> : vector<128xf32>
    %21 = vector.multi_reduction <add>, %20, %cst_14 [1] : vector<128x8xf32> to vector<128xf32>
    %22 = vector.shape_cast %21 : vector<128xf32> to vector<128x1xf32>
    %cst_15 = arith.constant dense<0.000000e+00> : vector<1xf32>
    %23 = vector.multi_reduction <add>, %22, %cst_15 [0] : vector<128x1xf32> to vector<1xf32>
    %24 = vector.shape_cast %23 : vector<1xf32> to vector<1x1xf32>
    %c0_16 = arith.constant 0 : index
    %c0_17 = arith.constant 0 : index
    %25 = vector.load %arg3[%c0_16, %c0_17] : memref<8x256xf32, #tpu.memory_space<vmem>>, vector<8x256xf32>
    %cst_18 = arith.constant dense<0.000000e+00> : vector<128x256xf32>
    %26 = tpu.matmul %0, %25, %cst_18 {dimension_numbers = #tpu.dot_dimension_numbers<[1], [0], [0], [1], [0, 0, 1, 1], [], []>} : vector<128x8xf32>, vector<8x256xf32>, vector<128x256xf32> -> vector<128x256xf32>
    %cst_19 = arith.constant dense<0xFF800000> : vector<128xf32>
    %27 = vector.multi_reduction <maximumf>, %26, %cst_19 [1] : vector<128x256xf32> to vector<128xf32>
    %28 = vector.shape_cast %27 : vector<128xf32> to vector<128x1xf32>
    %29 = vector.broadcast %28 : vector<128x1xf32> to vector<128x256xf32>
    %30 = arith.subf %26, %29 : vector<128x256xf32>
    %31 = math.exp %30 : vector<128x256xf32>
    %cst_20 = arith.constant dense<0.000000e+00> : vector<128xf32>
    %32 = vector.multi_reduction <add>, %31, %cst_20 [1] : vector<128x256xf32> to vector<128xf32>
    %33 = vector.shape_cast %32 : vector<128xf32> to vector<128x1xf32>
    %34 = tpu.reciprocal %33 : vector<128x1xf32> -> vector<128x1xf32>
    %35 = vector.broadcast %34 : vector<128x1xf32> to vector<128x256xf32>
    %36 = arith.mulf %31, %35 : vector<128x256xf32>
    %37 = arith.mulf %36, %26 : vector<128x256xf32>
    %cst_21 = arith.constant dense<0.000000e+00> : vector<128xf32>
    %38 = vector.multi_reduction <add>, %37, %cst_21 [1] : vector<128x256xf32> to vector<128xf32>
    %39 = vector.shape_cast %38 : vector<128xf32> to vector<128x1xf32>
    %40 = math.log %33 : vector<128x1xf32>
    %41 = arith.addf %28, %40 : vector<128x1xf32>
    %42 = arith.subf %41, %39 : vector<128x1xf32>
    %cst_22 = arith.constant dense<0.000000e+00> : vector<1xf32>
    %43 = vector.multi_reduction <add>, %42, %cst_22 [0] : vector<128x1xf32> to vector<1xf32>
    %44 = vector.shape_cast %43 : vector<1xf32> to vector<1x1xf32>
    %45 = tpu.iota {dimensions = array<i32: 0>} : vector<8x128xi32>
    %c0_i32 = arith.constant 0 : i32
    %46 = vector.broadcast %c0_i32 : i32 to vector<8x128xi32>
    %47 = arith.cmpi eq, %45, %46 : vector<8x128xi32>
    %cst_23 = arith.constant 1.000000e+00 : f32
    %cst_24 = arith.constant 0.000000e+00 : f32
    %48 = vector.broadcast %cst_23 : f32 to vector<8x128xf32>
    %49 = vector.broadcast %cst_24 : f32 to vector<8x128xf32>
    %50 = arith.select %47, %48, %49 : vector<8x128xi1>, vector<8x128xf32>
    %cst_25 = arith.constant dense<0.000000e+00> : vector<8x256xf32>
    %51 = tpu.matmul %50, %36, %cst_25 {dimension_numbers = #tpu.dot_dimension_numbers<[1], [0], [0], [1], [0, 0, 1, 1], [], []>} : vector<8x128xf32>, vector<128x256xf32>, vector<8x256xf32> -> vector<8x256xf32>
    %c0_26 = arith.constant 0 : index
    %c0_27 = arith.constant 0 : index
    %52 = vector.load %arg7[%c0_26, %c0_27] : memref<8x256xf32, #tpu.memory_space<vmem>>, vector<8x256xf32>
    tpu.vector_store %arg7[%c0_26, %c0_27], %51 {strides = array<i32>} : memref<8x256xf32, #tpu.memory_space<vmem>>, vector<8x256xf32>,
    %53 = tpu.iota {dimensions = array<i32: 0>} : vector<8x128xi32>
    %54 = tpu.iota {dimensions = array<i32: 1>} : vector<8x128xi32>
    %c0_i32_28 = arith.constant 0 : i32
    %55 = vector.broadcast %c0_i32_28 : i32 to vector<8x128xi32>
    %56 = arith.cmpi eq, %53, %55 : vector<8x128xi32>
    %c0_i32_29 = arith.constant 0 : i32
    %57 = vector.broadcast %c0_i32_29 : i32 to vector<8x128xi32>
    %58 = arith.cmpi eq, %54, %57 : vector<8x128xi32>
    %59 = arith.andi %56, %58 : vector<8x128xi1>
    %cst_30 = arith.constant 0.000000e+00 : f32
    %60 = vector.shape_cast %24 : vector<1x1xf32> to vector<1x1xf32>
    %61 = vector.broadcast %60 : vector<1x1xf32> to vector<8x128xf32>
    %62 = vector.broadcast %cst_30 : f32 to vector<8x128xf32>
    %63 = arith.select %59, %61, %62 : vector<8x128xi1>, vector<8x128xf32>
    %c0_i32_31 = arith.constant 0 : i32
    %64 = vector.broadcast %c0_i32_31 : i32 to vector<8x128xi32>
    %65 = arith.cmpi eq, %53, %64 : vector<8x128xi32>
    %c1_i32 = arith.constant 1 : i32
    %66 = vector.broadcast %c1_i32 : i32 to vector<8x128xi32>
    %67 = arith.cmpi eq, %54, %66 : vector<8x128xi32>
    %68 = arith.andi %65, %67 : vector<8x128xi1>
    %cst_32 = arith.constant 0.000000e+00 : f32
    %69 = vector.shape_cast %44 : vector<1x1xf32> to vector<1x1xf32>
    %70 = vector.broadcast %69 : vector<1x1xf32> to vector<8x128xf32>
    %71 = vector.broadcast %cst_32 : f32 to vector<8x128xf32>
    %72 = arith.select %68, %70, %71 : vector<8x128xi1>, vector<8x128xf32>
    %73 = arith.addf %63, %72 : vector<8x128xf32>
    %c0_33 = arith.constant 0 : index
    %c0_34 = arith.constant 0 : index
    %74 = vector.load %arg8[%c0_33, %c0_34] : memref<8x128xf32, #tpu.memory_space<vmem>>, vector<8x128xf32>
    tpu.vector_store %arg8[%c0_33, %c0_34], %73 {strides = array<i32>} : memref<8x128xf32, #tpu.memory_space<vmem>>, vector<8x128xf32>,
    return
  }
  func.func @transform_0(%arg0: i32) -> (i32, i32) {
    %c0_i32 = arith.constant 0 : i32
    %c0_i32_0 = arith.constant 0 : i32
    return %arg0, %c0_i32 : i32, i32
  }
  func.func @transform_1(%arg0: i32) -> (i32, i32) {
    %c0_i32 = arith.constant 0 : i32
    %c0_i32_0 = arith.constant 0 : i32
    return %arg0, %c0_i32 : i32, i32
  }
  func.func @transform_2(%arg0: i32) -> (i32, i32) {
    %c0_i32 = arith.constant 0 : i32
    %c0_i32_0 = arith.constant 0 : i32
    %c0_i32_1 = arith.constant 0 : i32
    return %c0_i32, %c0_i32_0 : i32, i32
  }
  func.func @transform_3(%arg0: i32) -> (i32, i32) {
    %c0_i32 = arith.constant 0 : i32
    %c0_i32_0 = arith.constant 0 : i32
    %c0_i32_1 = arith.constant 0 : i32
    return %c0_i32, %c0_i32_0 : i32, i32
  }
  func.func @transform_4(%arg0: i32) -> (i32, i32) {
    %c0_i32 = arith.constant 0 : i32
    %c0_i32_0 = arith.constant 0 : i32
    return %arg0, %c0_i32 : i32, i32
  }
  func.func @transform_5(%arg0: i32) -> (i32, i32) {
    %c0_i32 = arith.constant 0 : i32
    %c0_i32_0 = arith.constant 0 : i32
    return %arg0, %c0_i32 : i32, i32
  }
  func.func @transform_6(%arg0: i32) -> (i32, i32) {
    %c0_i32 = arith.constant 0 : i32
    %c0_i32_0 = arith.constant 0 : i32
    return %arg0, %c0_i32 : i32, i32
  }
  func.func @transform_7(%arg0: i32) -> (i32, i32) {
    %c0_i32 = arith.constant 0 : i32
    %c0_i32_0 = arith.constant 0 : i32
    return %arg0, %c0_i32 : i32, i32
  }
}

</mosaic_0001>

<llo_original>
// kernel: tpu_custom_call.1
$region0: #{tpu_custom_call.1}
  #allocation0 [shape = 'u32[]', space=smem, size = 0x4, offset = 0x4, fixed_abs, tag = 'smem constant byte address 0x4 - core index']
  #allocation1 [shape = 'u32[72,128]{1,0:T(1,128)}', space=vmem, size = 0x9000, scoped, tag = 'internal scratch']
  %s0 = inlined_call_operand.vmem [shape: f32[512,8], index: 0, kind: input, shape index: {}]
  %s1 = inlined_call_operand.vmem [shape: f32[32,128], index: 1, kind: input, shape index: {}]
  %s2 = inlined_call_operand.vmem [shape: f32[8,256], index: 2, kind: input, shape index: {}]
  %s3 = inlined_call_operand.vmem [shape: f32[8,128], index: 3, kind: input, shape index: {}]
  %s4 = inlined_call_operand.hbm [shape: f32[32,128], index: 4, kind: output, shape index: {0}]
  %s5 = inlined_call_operand.vmem [shape: s32[512,1], index: 5, kind: output, shape index: {1}]
  %s6 = inlined_call_operand.hbm [shape: f32[32,256], index: 6, kind: output, shape index: {2}]
  %s7 = inlined_call_operand.hbm [shape: f32[32,128], index: 7, kind: output, shape index: {3}]
  %8 = xla_tuple %s4, %s5, %s6, %s7
  %s9 = sld [smem:[#allocation0]]
  $region73: #{tpu_custom_call.1} parent=0
    _
  %s11 = ssub.s32 1, %s9
  %s12 = scalar_select 0, %s11, %s9
  $region1: #{tpu_custom_call.1} parent=0
    #allocation2 [shape = 'u8[8192]{0}', space=vmem, size = 0x2000, scoped, tag = 'output window, operand 0']
    #allocation3 [shape = 's32[2]{0}', space=sflag, size = 0x8, scoped, tag = 'scoped memory for tpu_custom_call.1']
    #allocation4 [shape = 'u8[16384]{0}', space=vmem, size = 0x4000, scoped, tag = 'output window, operand 2']
    #allocation5 [shape = 's32[2]{0}', space=sflag, size = 0x8, scoped, tag = 'scoped memory for tpu_custom_call.1']
    #allocation6 [shape = 'u8[8192]{0}', space=vmem, size = 0x2000, scoped, tag = 'output window, operand 3']
    %13 = vsyncpa [#allocation3], 0
    %s14 = scalar_lea.sflag [#allocation3], 1
    %15 = vsyncpa %s14, 0
    %16 = vsyncpa [#allocation5], 0
    %s17 = scalar_lea.sflag [#allocation5], 1
    %18 = vsyncpa %s17, 0
    loop: start=0, step=1, limit=6
    $region2: #{tpu_custom_call.1} parent=1 // loop_pre_header
      _
    $region3: #{tpu_custom_call.1} parent=1 // loop_header
      %s20 = sphi 0, %s24
      %p21 = scmp.ge.s32.totalorder %s20, 6
      %s30 = sphi 0, %s32
      %s33 = sphi 0, %s30
      %s34 = sphi 0, %s33
      %s50 = sphi 0, %s34
      %s56 = sphi 0, %s58
      %s59 = sphi 0, %s56
      %s60 = sphi 0, %s59
      %s76 = sphi 0, %s60
      %s80 = sphi 0, %s80
      %s82 = sphi 0, %s80
      %s83 = sphi 0, %s82
      %s97 = sphi 0, %s83
      %s101 = sphi 0, %s101
      %s103 = sphi 0, %s101
      %s104 = sphi 0, %s103
      %s118 = sphi 0, %s104
      %s124 = sphi 0, %s126
      %s127 = sphi 0, %s124
      %s128 = sphi 0, %s127
      %s144 = sphi 0, %s128
      %s150 = sphi 0, %s152
      %s153 = sphi 0, %s150
      %s154 = sphi 0, %s153
      %s170 = sphi 0, %s154
      %s176 = sphi 0, %s178
      %s179 = sphi 0, %s176
      %s180 = sphi 0, %s179
      %s196 = sphi 0, %s180
      %s202 = sphi 0, %s204
      %s205 = sphi 0, %s202
      %s206 = sphi 0, %s205
      %s222 = sphi 0, %s206
    $region4: #{tpu_custom_call.1} parent=1 // loop_header_branch
      %23 = sbr.rel (%p21) target = $region8
    $region5: #{tpu_custom_call.1} parent=1 // loop_body
      %s25 = ssub.s32 %s20, 1
      %s26 = ssub.s32 %s20, 2
      %s27 = sadd.s32 %s20, 1
      %s28 = ssub.s32 %s20, %s27
      %p29 = scmp.eq.s32.totalorder %s28, 0
      %s31 = sadd.s32 %s30, 1
      %s32 = scalar_select %p29, %s30, %s31
      %p35 = pneg %p29
      %p36 = scmp.eq.s32.totalorder %s20, 3
      %p37 = por %p35, %p36
      %p38 = scmp.ne.s32.totalorder %s30, %s33
      %p39 = scmp.eq.s32.totalorder %s20, 0
      %p40 = por %p38, %p39
      %p41 = scmp.ne.s32.totalorder %s30, %s33
      %p42 = scmp.eq.s32.totalorder %s25, 3
      %p43 = por %p41, %p42
      %p44 = scmp.ne.s32.totalorder %s33, %s34
      %p45 = scmp.eq.s32.totalorder %s25, 0
      %p46 = por %p44, %p45
      %p47 = scmp.ne.s32.totalorder %s33, %s34
      %p48 = scmp.eq.s32.totalorder %s26, 3
      %p49 = por %p47, %p48
      %p51 = scmp.ne.s32.totalorder %s34, %s50
      %p52 = scmp.eq.s32.totalorder %s26, 0
      %p53 = por %p51, %p52
      %s54 = ssub.s32 %s20, %s27
      %p55 = scmp.eq.s32.totalorder %s54, 0
      %s57 = sadd.s32 %s56, 1
      %s58 = scalar_select %p55, %s56, %s57
      %p61 = pneg %p55
      %p62 = scmp.eq.s32.totalorder %s20, 3
      %p63 = por %p61, %p62
      %p64 = scmp.ne.s32.totalorder %s56, %s59
      %p65 = scmp.eq.s32.totalorder %s20, 0
      %p66 = por %p64, %p65
      %p67 = scmp.ne.s32.totalorder %s56, %s59
      %p68 = scmp.eq.s32.totalorder %s25, 3
      %p69 = por %p67, %p68
      %p70 = scmp.ne.s32.totalorder %s59, %s60
      %p71 = scmp.eq.s32.totalorder %s25, 0
      %p72 = por %p70, %p71
      %p73 = scmp.ne.s32.totalorder %s59, %s60
      %p74 = scmp.eq.s32.totalorder %s26, 3
      %p75 = por %p73, %p74
      %p77 = scmp.ne.s32.totalorder %s60, %s76
      %p78 = scmp.eq.s32.totalorder %s26, 0
      %p79 = por %p77, %p78
      %s81 = sadd.s32 %s80, 1
      %p84 = scmp.eq.s32.totalorder %s20, 3
      %p85 = scmp.ne.s32.totalorder %s80, %s82
      %p86 = scmp.eq.s32.totalorder %s20, 0
      %p87 = por %p85, %p86
      %p88 = scmp.ne.s32.totalorder %s80, %s82
      %p89 = scmp.eq.s32.totalorder %s25, 3
      %p90 = por %p88, %p89
      %p91 = scmp.ne.s32.totalorder %s82, %s83
      %p92 = scmp.eq.s32.totalorder %s25, 0
      %p93 = por %p91, %p92
      %p94 = scmp.ne.s32.totalorder %s82, %s83
      %p95 = scmp.eq.s32.totalorder %s26, 3
      %p96 = por %p94, %p95
      %p98 = scmp.ne.s32.totalorder %s83, %s97
      %p99 = scmp.eq.s32.totalorder %s26, 0
      %p100 = por %p98, %p99
      %s102 = sadd.s32 %s101, 1
      %p105 = scmp.eq.s32.totalorder %s20, 3
      %p106 = scmp.ne.s32.totalorder %s101, %s103
      %p107 = scmp.eq.s32.totalorder %s20, 0
      %p108 = por %p106, %p107
      %p109 = scmp.ne.s32.totalorder %s101, %s103
      %p110 = scmp.eq.s32.totalorder %s25, 3
      %p111 = por %p109, %p110
      %p112 = scmp.ne.s32.totalorder %s103, %s104
      %p113 = scmp.eq.s32.totalorder %s25, 0
      %p114 = por %p112, %p113
      %p115 = scmp.ne.s32.totalorder %s103, %s104
      %p116 = scmp.eq.s32.totalorder %s26, 3
      %p117 = por %p115, %p116
      %p119 = scmp.ne.s32.totalorder %s104, %s118
      %p120 = scmp.eq.s32.totalorder %s26, 0
      %p121 = por %p119, %p120
      %s122 = ssub.s32 %s20, %s27
      %p123 = scmp.eq.s32.totalorder %s122, 0
      %s125 = sadd.s32 %s124, 1
      %s126 = scalar_select %p123, %s124, %s125
      %p129 = pneg %p123
      %p130 = scmp.eq.s32.totalorder %s20, 3
      %p131 = por %p129, %p130
      %p132 = scmp.ne.s32.totalorder %s124, %s127
      %p133 = scmp.eq.s32.totalorder %s20, 0
      %p134 = por %p132, %p133
      %p135 = scmp.ne.s32.totalorder %s124, %s127
      %p136 = scmp.eq.s32.totalorder %s25, 3
      %p137 = por %p135, %p136
      %p138 = scmp.ne.s32.totalorder %s127, %s128
      %p139 = scmp.eq.s32.totalorder %s25, 0
      %p140 = por %p138, %p139
      %p141 = scmp.ne.s32.totalorder %s127, %s128
      %p142 = scmp.eq.s32.totalorder %s26, 3
      %p143 = por %p141, %p142
      %p145 = scmp.ne.s32.totalorder %s128, %s144
      %p146 = scmp.eq.s32.totalorder %s26, 0
      %p147 = por %p145, %p146
      %s148 = ssub.s32 %s20, %s27
      %p149 = scmp.eq.s32.totalorder %s148, 0
      %s151 = sadd.s32 %s150, 1
      %s152 = scalar_select %p149, %s150, %s151
      %p155 = pneg %p149
      %p156 = scmp.eq.s32.totalorder %s20, 3
      %p157 = por %p155, %p156
      %p158 = scmp.ne.s32.totalorder %s150, %s153
      %p159 = scmp.eq.s32.totalorder %s20, 0
      %p160 = por %p158, %p159
      %p161 = scmp.ne.s32.totalorder %s150, %s153
      %p162 = scmp.eq.s32.totalorder %s25, 3
      %p163 = por %p161, %p162
      %p164 = scmp.ne.s32.totalorder %s153, %s154
      %p165 = scmp.eq.s32.totalorder %s25, 0
      %p166 = por %p164, %p165
      %p167 = scmp.ne.s32.totalorder %s153, %s154
      %p168 = scmp.eq.s32.totalorder %s26, 3
      %p169 = por %p167, %p168
      %p171 = scmp.ne.s32.totalorder %s154, %s170
      %p172 = scmp.eq.s32.totalorder %s26, 0
      %p173 = por %p171, %p172
      %s174 = ssub.s32 %s20, %s27
      %p175 = scmp.eq.s32.totalorder %s174, 0
      %s177 = sadd.s32 %s176, 1
      %s178 = scalar_select %p175, %s176, %s177
      %p181 = pneg %p175
      %p182 = scmp.eq.s32.totalorder %s20, 3
      %p183 = por %p181, %p182
      %p184 = scmp.ne.s32.totalorder %s176, %s179
      %p185 = scmp.eq.s32.totalorder %s20, 0
      %p186 = por %p184, %p185
      %p187 = scmp.ne.s32.totalorder %s176, %s179
      %p188 = scmp.eq.s32.totalorder %s25, 3
      %p189 = por %p187, %p188
      %p190 = scmp.ne.s32.totalorder %s179, %s180
      %p191 = scmp.eq.s32.totalorder %s25, 0
      %p192 = por %p190, %p191
      %p193 = scmp.ne.s32.totalorder %s179, %s180
      %p194 = scmp.eq.s32.totalorder %s26, 3
      %p195 = por %p193, %p194
      %p197 = scmp.ne.s32.totalorder %s180, %s196
      %p198 = scmp.eq.s32.totalorder %s26, 0
      %p199 = por %p197, %p198
      %s200 = ssub.s32 %s20, %s27
      %p201 = scmp.eq.s32.totalorder %s200, 0
      %s203 = sadd.s32 %s202, 1
      %s204 = scalar_select %p201, %s202, %s203
      %p207 = pneg %p201
      %p208 = scmp.eq.s32.totalorder %s20, 3
      %p209 = por %p207, %p208
      %p210 = scmp.ne.s32.totalorder %s202, %s205
      %p211 = scmp.eq.s32.totalorder %s20, 0
      %p212 = por %p210, %p211
      %p213 = scmp.ne.s32.totalorder %s202, %s205
      %p214 = scmp.eq.s32.totalorder %s25, 3
      %p215 = por %p213, %p214
      %p216 = scmp.ne.s32.totalorder %s205, %s206
      %p217 = scmp.eq.s32.totalorder %s25, 0
      %p218 = por %p216, %p217
      %p219 = scmp.ne.s32.totalorder %s205, %s206
      %p220 = scmp.eq.s32.totalorder %s26, 3
      %p221 = por %p219, %p220
      %p223 = scmp.ne.s32.totalorder %s206, %s222
      %p224 = scmp.eq.s32.totalorder %s26, 0
      %p225 = por %p223, %p224
      %p226 = scmp.le.s32.totalorder 1, %s20
      %p227 = scmp.lt.s32.totalorder %s20, 5
      %p228 = pnand %p226, %p227
      %p229 = pneg %p228
      // Predicated region
      $region9: #{tpu_custom_call.1} parent=5 // pred_check
        _
      $region10: #{tpu_custom_call.1} parent=5 // pred_check_branch
        %231 = sbr.rel (%p228) target = $region12
      $region11: #{tpu_custom_call.1} parent=5 // pred_region
        %s232 = ssub.s32 %s20, 1
        // Predicated region
        $region13: #{tpu_custom_call.1} parent=11 // pred_check
          %p233 = pneg %p93
        $region14: #{tpu_custom_call.1} parent=11 // pred_check_branch
          %235 = sbr.rel (%p233) target = $region16
        $region15: #{tpu_custom_call.1} parent=11 // pred_region
          _
        $region16: #{tpu_custom_call.1} parent=11 // pred_fallthru
          _
        // Predicated region
        $region17: #{tpu_custom_call.1} parent=11 // pred_check
          %p236 = pneg %p114
        $region18: #{tpu_custom_call.1} parent=11 // pred_check_branch
          %238 = sbr.rel (%p236) target = $region20
        $region19: #{tpu_custom_call.1} parent=11 // pred_region
          _
        $region20: #{tpu_custom_call.1} parent=11 // pred_fallthru
          _
      $region12: #{tpu_custom_call.1} parent=5 // pred_fallthru
        _
      %p239 = scmp.lt.s32.totalorder %s20, 4
      // Predicated region
      $region21: #{tpu_custom_call.1} parent=5 // pred_check
        %p240 = pneg %p239
      $region22: #{tpu_custom_call.1} parent=5 // pred_check_branch
        %242 = sbr.rel (%p240) target = $region24
      $region23: #{tpu_custom_call.1} parent=5 // pred_region
        // Predicated region
        $region25: #{tpu_custom_call.1} parent=23 // pred_check
          %p243 = pneg %p40
        $region26: #{tpu_custom_call.1} parent=23 // pred_check_branch
          %245 = sbr.rel (%p243) target = $region28
        $region27: #{tpu_custom_call.1} parent=23 // pred_region
          %s246 = smul.u32 16, %s20
          %p247 = scmp.lt.s32.totalorder %s246, 63
          %s248 = scalar_select %p247, %s246, 63
          %s249 = smul.addr %s248, 8
          %s250 = scalar_lea.vmem %s0, %s249
          %s251 = smul.u32 16, %s20
        $region28: #{tpu_custom_call.1} parent=23 // pred_fallthru
          _
        // Predicated region
        $region29: #{tpu_custom_call.1} parent=23 // pred_check
          %p252 = pneg %p66
        $region30: #{tpu_custom_call.1} parent=23 // pred_check_branch
          %254 = sbr.rel (%p252) target = $region32
        $region31: #{tpu_custom_call.1} parent=23 // pred_region
          %p255 = scmp.lt.s32.totalorder %s20, 3
          %s256 = scalar_select %p255, %s20, 3
          %s257 = smul.addr %s256, 8
          %s258 = scalar_lea.vmem %s1, %s257
        $region32: #{tpu_custom_call.1} parent=23 // pred_fallthru
          _
      $region24: #{tpu_custom_call.1} parent=5 // pred_fallthru
        _
      %p259 = scmp.le.s32.totalorder 1, %s20
      %p260 = scmp.lt.s32.totalorder %s20, 5
      %p261 = pnand %p259, %p260
      %p262 = pneg %p261
      // Predicated region
      $region33: #{tpu_custom_call.1} parent=5 // pred_check
        _
      $region34: #{tpu_custom_call.1} parent=5 // pred_check_branch
        %264 = sbr.rel (%p261) target = $region36
      $region35: #{tpu_custom_call.1} parent=5 // pred_region
        %s265 = ssub.s32 %s20, 1
        %s266 = smul.u32 16, %s25
        %p267 = scmp.lt.s32.totalorder %s266, 63
        %s268 = scalar_select %p267, %s266, 63
        %s269 = smul.addr %s268, 8
        %s270 = scalar_lea.vmem %s0, %s269
        %p271 = pneg %p46
        %p272 = pneg %p43
        %p273 = scmp.lt.s32.totalorder %s25, 3
        %s274 = scalar_select %p273, %s25, 3
        %s275 = smul.addr %s274, 8
        %s276 = scalar_lea.vmem %s1, %s275
        %p277 = pneg %p72
        %p278 = pneg %p69
        %p279 = pneg %p93
        %p280 = pneg %p90
        %p281 = pneg %p114
        %p282 = pneg %p111
        %p283 = pneg %p140
        %p284 = pneg %p137
        %s285 = sand.u32 %s127, 1
        %s286 = scalar_lea.sflag [#allocation3], %s285
        %s287 = sand.u32 %s127, 1
        %s288 = smul.addr %s287, 8
        %s289 = scalar_lea.vmem [#allocation2], %s288
        %p290 = pneg %p166
        %p291 = pneg %p163
        %s292 = smul.u32 16, %s25
        %p293 = scmp.lt.s32.totalorder %s292, 63
        %s294 = scalar_select %p293, %s292, 63
        %s295 = smul.addr %s294, 8
        %s296 = scalar_lea.vmem %s5, %s295
        %p297 = pneg %p192
        %p298 = pneg %p189
        %s299 = sand.u32 %s25, 1
        %s300 = scalar_lea.sflag [#allocation5], %s299
        %s301 = sand.u32 %s179, 1
        %s302 = smul.addr %s301, 16
        %s303 = scalar_lea.vmem [#allocation4], %s302
        %p304 = pneg %p218
        %p305 = pneg %p215
        %s306 = sand.u32 %s25, 1
        %s307 = scalar_lea.sflag [#allocation5], %s306
        %s308 = sand.u32 %s205, 1
        %s309 = smul.addr %s308, 8
        %s310 = scalar_lea.vmem [#allocation6], %s309
        %s311 = smul.u32 16, %s25
        %p312 = scmp.lt.s32.totalorder %s311, 63
        %s313 = scalar_select %p312, %s311, 63
        %s314 = smul.addr %s313, 8
        %s315 = scalar_lea.vmem %s0, %s314
        %s316 = smul.u32 16, %s25
        %p317 = scmp.lt.s32.totalorder %s25, 3
        %s318 = scalar_select %p317, %s25, 3
        %s319 = smul.addr %s318, 8
        %s320 = scalar_lea.vmem %s1, %s319
        %s321 = smul.u32 16, %s25
        %p322 = scmp.lt.s32.totalorder %s321, 63
        %s323 = scalar_select %p322, %s321, 63
        %s324 = smul.addr %s323, 8
        %s325 = scalar_lea.vmem %s5, %s324
        %s326 = smul.u32 16, %s25
        %v327 = vld [vmem:[%s315] sm:$0xff]
        %v328 = vld [vmem:[%s315 + $0x8] sm:$0xff]
        %v329 = vld [vmem:[%s315 + $0x10] sm:$0xff]
        %v330 = vld [vmem:[%s315 + $0x18] sm:$0xff]
        %v331 = vld [vmem:[%s315 + $0x20] sm:$0xff]
        %v332 = vld [vmem:[%s315 + $0x28] sm:$0xff]
        %v333 = vld [vmem:[%s315 + $0x30] sm:$0xff]
        %v334 = vld [vmem:[%s315 + $0x38] sm:$0xff]
        %v335 = vld [vmem:[%s315 + $0x40] sm:$0xff]
        %v336 = vld [vmem:[%s315 + $0x48] sm:$0xff]
        %v337 = vld [vmem:[%s315 + $0x50] sm:$0xff]
        %v338 = vld [vmem:[%s315 + $0x58] sm:$0xff]
        %v339 = vld [vmem:[%s315 + $0x60] sm:$0xff]
        %v340 = vld [vmem:[%s315 + $0x68] sm:$0xff]
        %v341 = vld [vmem:[%s315 + $0x70] sm:$0xff]
        %v342 = vld [vmem:[%s315 + $0x78] sm:$0xff]
        %v343 = vld [vmem:[%s320] sm:$0xff]
        %vm344 = vcmp.gt.f32.partialorder %v343, 0.0
        %v345 = vsel %vm344, 1.0, -1.0
        %346 = vst [vmem:[%s289] sm:$0xff] %v345
        %vm347 = vcmp.gt.f32.partialorder %v327, 0.0
        %vm348 = vcmp.gt.f32.partialorder %v328, 0.0
        %vm349 = vcmp.gt.f32.partialorder %v329, 0.0
        %vm350 = vcmp.gt.f32.partialorder %v330, 0.0
        %vm351 = vcmp.gt.f32.partialorder %v331, 0.0
        %vm352 = vcmp.gt.f32.partialorder %v332, 0.0
        %vm353 = vcmp.gt.f32.partialorder %v333, 0.0
        %vm354 = vcmp.gt.f32.partialorder %v334, 0.0
        %vm355 = vcmp.gt.f32.partialorder %v335, 0.0
        %vm356 = vcmp.gt.f32.partialorder %v336, 0.0
        %vm357 = vcmp.gt.f32.partialorder %v337, 0.0
        %vm358 = vcmp.gt.f32.partialorder %v338, 0.0
        %vm359 = vcmp.gt.f32.partialorder %v339, 0.0
        %vm360 = vcmp.gt.f32.partialorder %v340, 0.0
        %vm361 = vcmp.gt.f32.partialorder %v341, 0.0
        %vm362 = vcmp.gt.f32.partialorder %v342, 0.0
        %v363 = vsel %vm347, 1, 0
        %v364 = vsel %vm348, 1, 0
        %v365 = vsel %vm349, 1, 0
        %v366 = vsel %vm350, 1, 0
        %v367 = vsel %vm351, 1, 0
        %v368 = vsel %vm352, 1, 0
        %v369 = vsel %vm353, 1, 0
        %v370 = vsel %vm354, 1, 0
        %v371 = vsel %vm355, 1, 0
        %v372 = vsel %vm356, 1, 0
        %v373 = vsel %vm357, 1, 0
        %v374 = vsel %vm358, 1, 0
        %v375 = vsel %vm359, 1, 0
        %v376 = vsel %vm360, 1, 0
        %v377 = vsel %vm361, 1, 0
        %v378 = vsel %vm362, 1, 0
        %v379 = vcvt.s32.f32 %v363
        %v380 = vcvt.s32.f32 %v364
        %v381 = vcvt.s32.f32 %v365
        %v382 = vcvt.s32.f32 %v366
        %v383 = vcvt.s32.f32 %v367
        %v384 = vcvt.s32.f32 %v368
        %v385 = vcvt.s32.f32 %v369
        %v386 = vcvt.s32.f32 %v370
        %v387 = vcvt.s32.f32 %v371
        %v388 = vcvt.s32.f32 %v372
        %v389 = vcvt.s32.f32 %v373
        %v390 = vcvt.s32.f32 %v374
        %v391 = vcvt.s32.f32 %v375
        %v392 = vcvt.s32.f32 %v376
        %v393 = vcvt.s32.f32 %v377
        %v394 = vcvt.s32.f32 %v378
        %v395 = vld [vmem:[%s3] sm:$0xff]
        %vm396 = vcmask 64512
        %v398 = vsel %vm396, %v379, 0
        %v401 = vsel %vm396, %v380, 0
        %v404 = vsel %vm396, %v381, 0
        %v407 = vsel %vm396, %v382, 0
        %v410 = vsel %vm396, %v383, 0
        %v413 = vsel %vm396, %v384, 0
        %v416 = vsel %vm396, %v385, 0
        %v419 = vsel %vm396, %v386, 0
        %v422 = vsel %vm396, %v387, 0
        %v425 = vsel %vm396, %v388, 0
        %v428 = vsel %vm396, %v389, 0
        %v431 = vsel %vm396, %v390, 0
        %v434 = vsel %vm396, %v391, 0
        %v437 = vsel %vm396, %v392, 0
        %v440 = vsel %vm396, %v393, 0
        %v443 = vsel %vm396, %v394, 0
        %445 = vmatpush.msra.mxu0 0.0
        %446 = vmatpush.msra.mxu0 0.0
        %447 = vmatpush.msra.mxu0 0.0
        %448 = vmatpush.msra.mxu0 0.0
        %449 = vmatpush.msra.mxu0 0.0
        %450 = vmatpush.msra.mxu0 0.0
        %451 = vmatpush.msra.mxu0 0.0
        %452 = vmatpush.msra.mxu0 0.0
        %453 = vmatpush.msra.mxu0 0.0
        %454 = vmatpush.msra.mxu0 0.0
        %455 = vmatpush.msra.mxu0 0.0
        %456 = vmatpush.msra.mxu0 0.0
        %457 = vmatpush.msra.mxu0 0.0
        %458 = vmatpush.msra.mxu0 0.0
        %459 = vmatpush.msra.mxu0 0.0
        %460 = vmatpush.msra.mxu0 %v395
        %461 = vmatmul.f32.gmra.mxu0 %v398
        %v462 = vpop.f32.mrf.mxu0
        %v463 = vadd.f32 0.0, %v462
        %464 = vmatmul.f32.gmra.mxu0 %v401
        %v465 = vpop.f32.mrf.mxu0
        %v466 = vadd.f32 0.0, %v465
        %467 = vmatmul.f32.gmra.mxu0 %v404
        %v468 = vpop.f32.mrf.mxu0
        %v469 = vadd.f32 0.0, %v468
        %470 = vmatmul.f32.gmra.mxu0 %v407
        %v471 = vpop.f32.mrf.mxu0
        %v472 = vadd.f32 0.0, %v471
        %473 = vmatmul.f32.gmra.mxu0 %v410
        %v474 = vpop.f32.mrf.mxu0
        %v475 = vadd.f32 0.0, %v474
        %476 = vmatmul.f32.gmra.mxu0 %v413
        %v477 = vpop.f32.mrf.mxu0
        %v478 = vadd.f32 0.0, %v477
        %479 = vmatmul.f32.gmra.mxu0 %v416
        %v480 = vpop.f32.mrf.mxu0
        %v481 = vadd.f32 0.0, %v480
        %482 = vmatmul.f32.gmra.mxu0 %v419
        %v483 = vpop.f32.mrf.mxu0
        %v484 = vadd.f32 0.0, %v483
        %485 = vmatmul.f32.gmra.mxu0 %v422
        %v486 = vpop.f32.mrf.mxu0
        %v487 = vadd.f32 0.0, %v486
        %488 = vmatmul.f32.gmra.mxu0 %v425
        %v489 = vpop.f32.mrf.mxu0
        %v490 = vadd.f32 0.0, %v489
        %491 = vmatmul.f32.gmra.mxu0 %v428
        %v492 = vpop.f32.mrf.mxu0
        %v493 = vadd.f32 0.0, %v492
        %494 = vmatmul.f32.gmra.mxu0 %v431
        %v495 = vpop.f32.mrf.mxu0
        %v496 = vadd.f32 0.0, %v495
        %497 = vmatmul.f32.gmra.mxu0 %v434
        %v498 = vpop.f32.mrf.mxu0
        %v499 = vadd.f32 0.0, %v498
        %500 = vmatmul.f32.gmra.mxu0 %v437
        %v501 = vpop.f32.mrf.mxu0
        %v502 = vadd.f32 0.0, %v501
        %503 = vmatmul.f32.gmra.mxu0 %v440
        %v504 = vpop.f32.mrf.mxu0
        %v505 = vadd.f32 0.0, %v504
        %506 = vmatmul.f32.gmra.mxu0 %v443
        %v507 = vpop.f32.mrf.mxu0
        %v508 = vadd.f32 0.0, %v507
        %509 = vdwg.mxu0
        %v510 = vcvt.f32.s32.to.zero.pseudo %v463
        %v511 = vcvt.f32.s32.to.zero.pseudo %v466
        %v512 = vcvt.f32.s32.to.zero.pseudo %v469
        %v513 = vcvt.f32.s32.to.zero.pseudo %v472
        %v514 = vcvt.f32.s32.to.zero.pseudo %v475
        %v515 = vcvt.f32.s32.to.zero.pseudo %v478
        %v516 = vcvt.f32.s32.to.zero.pseudo %v481
        %v517 = vcvt.f32.s32.to.zero.pseudo %v484
        %v518 = vcvt.f32.s32.to.zero.pseudo %v487
        %v519 = vcvt.f32.s32.to.zero.pseudo %v490
        %v520 = vcvt.f32.s32.to.zero.pseudo %v493
        %v521 = vcvt.f32.s32.to.zero.pseudo %v496
        %v522 = vcvt.f32.s32.to.zero.pseudo %v499
        %v523 = vcvt.f32.s32.to.zero.pseudo %v502
        %v524 = vcvt.f32.s32.to.zero.pseudo %v505
        %v525 = vcvt.f32.s32.to.zero.pseudo %v508
        %vm526 = vcmask 7168
        %527 = vst.msk [vmem:[%s325] sm:$0xff] %vm526, %v510
        %528 = vst.msk [vmem:[%s325 + $0x8] sm:$0xff] %vm526, %v511
        %529 = vst.msk [vmem:[%s325 + $0x10] sm:$0xff] %vm526, %v512
        %530 = vst.msk [vmem:[%s325 + $0x18] sm:$0xff] %vm526, %v513
        %531 = vst.msk [vmem:[%s325 + $0x20] sm:$0xff] %vm526, %v514
        %532 = vst.msk [vmem:[%s325 + $0x28] sm:$0xff] %vm526, %v515
        %533 = vst.msk [vmem:[%s325 + $0x30] sm:$0xff] %vm526, %v516
        %534 = vst.msk [vmem:[%s325 + $0x38] sm:$0xff] %vm526, %v517
        %535 = vst.msk [vmem:[%s325 + $0x40] sm:$0xff] %vm526, %v518
        %536 = vst.msk [vmem:[%s325 + $0x48] sm:$0xff] %vm526, %v519
        %537 = vst.msk [vmem:[%s325 + $0x50] sm:$0xff] %vm526, %v520
        %538 = vst.msk [vmem:[%s325 + $0x58] sm:$0xff] %vm526, %v521
        %539 = vst.msk [vmem:[%s325 + $0x60] sm:$0xff] %vm526, %v522
        %540 = vst.msk [vmem:[%s325 + $0x68] sm:$0xff] %vm526, %v523
        %541 = vst.msk [vmem:[%s325 + $0x70] sm:$0xff] %vm526, %v524
        %542 = vst.msk [vmem:[%s325 + $0x78] sm:$0xff] %vm526, %v525
        %v543 = vand.u32 2147483647, %v327
        %v544 = vand.u32 2147483647, %v328
        %v545 = vand.u32 2147483647, %v329
        %v546 = vand.u32 2147483647, %v330
        %v547 = vand.u32 2147483647, %v331
        %v548 = vand.u32 2147483647, %v332
        %v549 = vand.u32 2147483647, %v333
        %v550 = vand.u32 2147483647, %v334
        %v551 = vand.u32 2147483647, %v335
        %v552 = vand.u32 2147483647, %v336
        %v553 = vand.u32 2147483647, %v337
        %v554 = vand.u32 2147483647, %v338
        %v555 = vand.u32 2147483647, %v339
        %v556 = vand.u32 2147483647, %v340
        %v557 = vand.u32 2147483647, %v341
        %v558 = vand.u32 2147483647, %v342
        %v559 = vsub.f32 %v543, 1.0
        %v560 = vsub.f32 %v544, 1.0
        %v561 = vsub.f32 %v545, 1.0
        %v562 = vsub.f32 %v546, 1.0
        %v563 = vsub.f32 %v547, 1.0
        %v564 = vsub.f32 %v548, 1.0
        %v565 = vsub.f32 %v549, 1.0
        %v566 = vsub.f32 %v550, 1.0
        %v567 = vsub.f32 %v551, 1.0
        %v568 = vsub.f32 %v552, 1.0
        %v569 = vsub.f32 %v553, 1.0
        %v570 = vsub.f32 %v554, 1.0
        %v571 = vsub.f32 %v555, 1.0
        %v572 = vsub.f32 %v556, 1.0
        %v573 = vsub.f32 %v557, 1.0
        %v574 = vsub.f32 %v558, 1.0
        %v575 = vmul.f32 %v559, %v559
        %v576 = vmul.f32 %v560, %v560
        %v577 = vmul.f32 %v561, %v561
        %v578 = vmul.f32 %v562, %v562
        %v579 = vmul.f32 %v563, %v563
        %v580 = vmul.f32 %v564, %v564
        %v581 = vmul.f32 %v565, %v565
        %v582 = vmul.f32 %v566, %v566
        %v583 = vmul.f32 %v567, %v567
        %v584 = vmul.f32 %v568, %v568
        %v585 = vmul.f32 %v569, %v569
        %v586 = vmul.f32 %v570, %v570
        %v587 = vmul.f32 %v571, %v571
        %v588 = vmul.f32 %v572, %v572
        %v589 = vmul.f32 %v573, %v573
        %v590 = vmul.f32 %v574, %v574
        %v591 = vsel %vm396, %v575, 0.0
        %592 = vadd.xlane.f32.xlu0 %v591
        %v593 = vpop.xlane.xlu0 %592
        %v594 = vsel %vm396, %v576, 0.0
        %595 = vadd.xlane.f32.xlu0 %v594
        %v596 = vpop.xlane.xlu0 %595
        %v597 = vsel %vm396, %v577, 0.0
        %598 = vadd.xlane.f32.xlu0 %v597
        %v599 = vpop.xlane.xlu0 %598
        %v600 = vsel %vm396, %v578, 0.0
        %601 = vadd.xlane.f32.xlu0 %v600
        %v602 = vpop.xlane.xlu0 %601
        %v603 = vsel %vm396, %v579, 0.0
        %604 = vadd.xlane.f32.xlu0 %v603
        %v605 = vpop.xlane.xlu0 %604
        %v606 = vsel %vm396, %v580, 0.0
        %607 = vadd.xlane.f32.xlu0 %v606
        %v608 = vpop.xlane.xlu0 %607
        %v609 = vsel %vm396, %v581, 0.0
        %610 = vadd.xlane.f32.xlu0 %v609
        %v611 = vpop.xlane.xlu0 %610
        %v612 = vsel %vm396, %v582, 0.0
        %613 = vadd.xlane.f32.xlu0 %v612
        %v614 = vpop.xlane.xlu0 %613
        %v615 = vsel %vm396, %v583, 0.0
        %616 = vadd.xlane.f32.xlu0 %v615
        %v617 = vpop.xlane.xlu0 %616
        %v618 = vsel %vm396, %v584, 0.0
        %619 = vadd.xlane.f32.xlu0 %v618
        %v620 = vpop.xlane.xlu0 %619
        %v621 = vsel %vm396, %v585, 0.0
        %622 = vadd.xlane.f32.xlu0 %v621
        %v623 = vpop.xlane.xlu0 %622
        %v624 = vsel %vm396, %v586, 0.0
        %625 = vadd.xlane.f32.xlu0 %v624
        %v626 = vpop.xlane.xlu0 %625
        %v627 = vsel %vm396, %v587, 0.0
        %628 = vadd.xlane.f32.xlu0 %v627
        %v629 = vpop.xlane.xlu0 %628
        %v630 = vsel %vm396, %v588, 0.0
        %631 = vadd.xlane.f32.xlu0 %v630
        %v632 = vpop.xlane.xlu0 %631
        %v633 = vsel %vm396, %v589, 0.0
        %634 = vadd.xlane.f32.xlu0 %v633
        %v635 = vpop.xlane.xlu0 %634
        %v636 = vsel %vm396, %v590, 0.0
        %637 = vadd.xlane.f32.xlu0 %v636
        %v638 = vpop.xlane.xlu0 %637
        %v639 = vadd.f32 %v593, %v596
        %v640 = vadd.f32 %v639, %v599
        %v641 = vadd.f32 %v640, %v602
        %v642 = vadd.f32 %v641, %v605
        %v643 = vadd.f32 %v642, %v608
        %v644 = vadd.f32 %v643, %v611
        %v645 = vadd.f32 %v644, %v614
        %v646 = vadd.f32 %v645, %v617
        %v647 = vadd.f32 %v646, %v620
        %v648 = vadd.f32 %v647, %v623
        %v649 = vadd.f32 %v648, %v626
        %v650 = vadd.f32 %v649, %v629
        %v651 = vadd.f32 %v650, %v632
        %v652 = vadd.f32 %v651, %v635
        %v653 = vadd.f32 %v652, %v638
        %v654 = vrot.slane %v653, 4
        %v655 = vadd.f32 %v653, %v654
        %v656 = vrot.slane %v655, 2
        %v657 = vadd.f32 %v655, %v656
        %v658 = vrot.slane %v657, 1
        %v659 = vadd.f32 %v657, %v658
        %v660 = vld [vmem:[%s2] sm:$0xff]
        %v661 = vld [vmem:[%s2 + $0x8] sm:$0xff]
        %v663 = vsel %vm396, %v327, 0
        %v666 = vsel %vm396, %v328, 0
        %v669 = vsel %vm396, %v329, 0
        %v672 = vsel %vm396, %v330, 0
        %v675 = vsel %vm396, %v331, 0
        %v678 = vsel %vm396, %v332, 0
        %v681 = vsel %vm396, %v333, 0
        %v684 = vsel %vm396, %v334, 0
        %v687 = vsel %vm396, %v335, 0
        %v690 = vsel %vm396, %v336, 0
        %v693 = vsel %vm396, %v337, 0
        %v696 = vsel %vm396, %v338, 0
        %v699 = vsel %vm396, %v339, 0
        %v702 = vsel %vm396, %v340, 0
        %v705 = vsel %vm396, %v341, 0
        %v708 = vsel %vm396, %v342, 0
        %710 = vmatpush.msra.mxu0 0.0
        %711 = vmatpush.msra.mxu0 0.0
        %712 = vmatpush.msra.mxu0 0.0
        %713 = vmatpush.msra.mxu0 0.0
        %714 = vmatpush.msra.mxu0 0.0
        %715 = vmatpush.msra.mxu0 0.0
        %716 = vmatpush.msra.mxu0 0.0
        %717 = vmatpush.msra.mxu0 0.0
        %718 = vmatpush.msra.mxu0 0.0
        %719 = vmatpush.msra.mxu0 0.0
        %720 = vmatpush.msra.mxu0 0.0
        %721 = vmatpush.msra.mxu0 0.0
        %722 = vmatpush.msra.mxu0 0.0
        %723 = vmatpush.msra.mxu0 0.0
        %724 = vmatpush.msra.mxu0 0.0
        %725 = vmatpush.msra.mxu0 %v660
        %726 = vmatmul.f32.gmra.mxu0 %v663
        %v727 = vpop.f32.mrf.mxu0
        %v728 = vadd.f32 0.0, %v727
        %729 = vmatmul.f32.gmra.mxu0 %v666
        %v730 = vpop.f32.mrf.mxu0
        %v731 = vadd.f32 0.0, %v730
        %732 = vmatmul.f32.gmra.mxu0 %v669
        %v733 = vpop.f32.mrf.mxu0
        %v734 = vadd.f32 0.0, %v733
        %735 = vmatmul.f32.gmra.mxu0 %v672
        %v736 = vpop.f32.mrf.mxu0
        %v737 = vadd.f32 0.0, %v736
        %738 = vmatmul.f32.gmra.mxu0 %v675
        %v739 = vpop.f32.mrf.mxu0
        %v740 = vadd.f32 0.0, %v739
        %741 = vmatmul.f32.gmra.mxu0 %v678
        %v742 = vpop.f32.mrf.mxu0
        %v743 = vadd.f32 0.0, %v742
        %744 = vmatmul.f32.gmra.mxu0 %v681
        %v745 = vpop.f32.mrf.mxu0
        %v746 = vadd.f32 0.0, %v745
        %747 = vmatmul.f32.gmra.mxu0 %v684
        %v748 = vpop.f32.mrf.mxu0
        %v749 = vadd.f32 0.0, %v748
        %750 = vmatmul.f32.gmra.mxu0 %v687
        %v751 = vpop.f32.mrf.mxu0
        %v752 = vadd.f32 0.0, %v751
        %753 = vmatmul.f32.gmra.mxu0 %v690
        %v754 = vpop.f32.mrf.mxu0
        %v755 = vadd.f32 0.0, %v754
        %756 = vmatmul.f32.gmra.mxu0 %v693
        %v757 = vpop.f32.mrf.mxu0
        %v758 = vadd.f32 0.0, %v757
        %759 = vmatmul.f32.gmra.mxu0 %v696
        %v760 = vpop.f32.mrf.mxu0
        %v761 = vadd.f32 0.0, %v760
        %762 = vmatmul.f32.gmra.mxu0 %v699
        %v763 = vpop.f32.mrf.mxu0
        %v764 = vadd.f32 0.0, %v763
        %765 = vmatmul.f32.gmra.mxu0 %v702
        %v766 = vpop.f32.mrf.mxu0
        %v767 = vadd.f32 0.0, %v766
        %768 = vmatmul.f32.gmra.mxu0 %v705
        %v769 = vpop.f32.mrf.mxu0
        %v770 = vadd.f32 0.0, %v769
        %771 = vmatmul.f32.gmra.mxu0 %v708
        %v772 = vpop.f32.mrf.mxu0
        %v773 = vadd.f32 0.0, %v772
        %774 = vdwg.mxu0
        %775 = vmatpush.msra.mxu0 0.0
        %776 = vmatpush.msra.mxu0 0.0
        %777 = vmatpush.msra.mxu0 0.0
        %778 = vmatpush.msra.mxu0 0.0
        %779 = vmatpush.msra.mxu0 0.0
        %780 = vmatpush.msra.mxu0 0.0
        %781 = vmatpush.msra.mxu0 0.0
        %782 = vmatpush.msra.mxu0 0.0
        %783 = vmatpush.msra.mxu0 0.0
        %784 = vmatpush.msra.mxu0 0.0
        %785 = vmatpush.msra.mxu0 0.0
        %786 = vmatpush.msra.mxu0 0.0
        %787 = vmatpush.msra.mxu0 0.0
        %788 = vmatpush.msra.mxu0 0.0
        %789 = vmatpush.msra.mxu0 0.0
        %790 = vmatpush.msra.mxu0 %v661
        %791 = vmatmul.f32.gmra.mxu0 %v663
        %v792 = vpop.f32.mrf.mxu0
        %v793 = vadd.f32 0.0, %v792
        %794 = vmatmul.f32.gmra.mxu0 %v666
        %v795 = vpop.f32.mrf.mxu0
        %v796 = vadd.f32 0.0, %v795
        %797 = vmatmul.f32.gmra.mxu0 %v669
        %v798 = vpop.f32.mrf.mxu0
        %v799 = vadd.f32 0.0, %v798
        %800 = vmatmul.f32.gmra.mxu0 %v672
        %v801 = vpop.f32.mrf.mxu0
        %v802 = vadd.f32 0.0, %v801
        %803 = vmatmul.f32.gmra.mxu0 %v675
        %v804 = vpop.f32.mrf.mxu0
        %v805 = vadd.f32 0.0, %v804
        %806 = vmatmul.f32.gmra.mxu0 %v678
        %v807 = vpop.f32.mrf.mxu0
        %v808 = vadd.f32 0.0, %v807
        %809 = vmatmul.f32.gmra.mxu0 %v681
        %v810 = vpop.f32.mrf.mxu0
        %v811 = vadd.f32 0.0, %v810
        %812 = vmatmul.f32.gmra.mxu0 %v684
        %v813 = vpop.f32.mrf.mxu0
        %v814 = vadd.f32 0.0, %v813
        %815 = vmatmul.f32.gmra.mxu0 %v687
        %v816 = vpop.f32.mrf.mxu0
        %v817 = vadd.f32 0.0, %v816
        %818 = vmatmul.f32.gmra.mxu0 %v690
        %v819 = vpop.f32.mrf.mxu0
        %v820 = vadd.f32 0.0, %v819
        %821 = vmatmul.f32.gmra.mxu0 %v693
        %v822 = vpop.f32.mrf.mxu0
        %v823 = vadd.f32 0.0, %v822
        %824 = vmatmul.f32.gmra.mxu0 %v696
        %v825 = vpop.f32.mrf.mxu0
        %v826 = vadd.f32 0.0, %v825
        %827 = vmatmul.f32.gmra.mxu0 %v699
        %v828 = vpop.f32.mrf.mxu0
        %v829 = vadd.f32 0.0, %v828
        %830 = vmatmul.f32.gmra.mxu0 %v702
        %v831 = vpop.f32.mrf.mxu0
        %v832 = vadd.f32 0.0, %v831
        %833 = vmatmul.f32.gmra.mxu0 %v705
        %v834 = vpop.f32.mrf.mxu0
        %v835 = vadd.f32 0.0, %v834
        %836 = vmatmul.f32.gmra.mxu0 %v708
        %v837 = vpop.f32.mrf.mxu0
        %v838 = vadd.f32 0.0, %v837
        %839 = vdwg.mxu0
        %v840 = vmax.f32 %v728, %v793
        %841 = vmax.xlane.f32.xlu0 %v840
        %v842 = vpop.xlane.xlu0 %841
        %v843 = vmax.f32 %v731, %v796
        %844 = vmax.xlane.f32.xlu0 %v843
        %v845 = vpop.xlane.xlu0 %844
        %v846 = vmax.f32 %v734, %v799
        %847 = vmax.xlane.f32.xlu0 %v846
        %v848 = vpop.xlane.xlu0 %847
        %v849 = vmax.f32 %v737, %v802
        %850 = vmax.xlane.f32.xlu0 %v849
        %v851 = vpop.xlane.xlu0 %850
        %v852 = vmax.f32 %v740, %v805
        %853 = vmax.xlane.f32.xlu0 %v852
        %v854 = vpop.xlane.xlu0 %853
        %v855 = vmax.f32 %v743, %v808
        %856 = vmax.xlane.f32.xlu0 %v855
        %v857 = vpop.xlane.xlu0 %856
        %v858 = vmax.f32 %v746, %v811
        %859 = vmax.xlane.f32.xlu0 %v858
        %v860 = vpop.xlane.xlu0 %859
        %v861 = vmax.f32 %v749, %v814
        %862 = vmax.xlane.f32.xlu0 %v861
        %v863 = vpop.xlane.xlu0 %862
        %v864 = vmax.f32 %v752, %v817
        %865 = vmax.xlane.f32.xlu0 %v864
        %v866 = vpop.xlane.xlu0 %865
        %v867 = vmax.f32 %v755, %v820
        %868 = vmax.xlane.f32.xlu0 %v867
        %v869 = vpop.xlane.xlu0 %868
        %v870 = vmax.f32 %v758, %v823
        %871 = vmax.xlane.f32.xlu0 %v870
        %v872 = vpop.xlane.xlu0 %871
        %v873 = vmax.f32 %v761, %v826
        %874 = vmax.xlane.f32.xlu0 %v873
        %v875 = vpop.xlane.xlu0 %874
        %v876 = vmax.f32 %v764, %v829
        %877 = vmax.xlane.f32.xlu0 %v876
        %v878 = vpop.xlane.xlu0 %877
        %v879 = vmax.f32 %v767, %v832
        %880 = vmax.xlane.f32.xlu0 %v879
        %v881 = vpop.xlane.xlu0 %880
        %v882 = vmax.f32 %v770, %v835
        %883 = vmax.xlane.f32.xlu0 %v882
        %v884 = vpop.xlane.xlu0 %883
        %v885 = vmax.f32 %v773, %v838
        %886 = vmax.xlane.f32.xlu0 %v885
        %v887 = vpop.xlane.xlu0 %886
        %v888 = vsub.f32 %v728, %v842
        %v889 = vsub.f32 %v793, %v842
        %v890 = vsub.f32 %v731, %v845
        %v891 = vsub.f32 %v796, %v845
        %v892 = vsub.f32 %v734, %v848
        %v893 = vsub.f32 %v799, %v848
        %v894 = vsub.f32 %v737, %v851
        %v895 = vsub.f32 %v802, %v851
        %v896 = vsub.f32 %v740, %v854
        %v897 = vsub.f32 %v805, %v854
        %v898 = vsub.f32 %v743, %v857
        %v899 = vsub.f32 %v808, %v857
        %v900 = vsub.f32 %v746, %v860
        %v901 = vsub.f32 %v811, %v860
        %v902 = vsub.f32 %v749, %v863
        %v903 = vsub.f32 %v814, %v863
        %v904 = vsub.f32 %v752, %v866
        %v905 = vsub.f32 %v817, %v866
        %v906 = vsub.f32 %v755, %v869
        %v907 = vsub.f32 %v820, %v869
        %v908 = vsub.f32 %v758, %v872
        %v909 = vsub.f32 %v823, %v872
        %v910 = vsub.f32 %v761, %v875
        %v911 = vsub.f32 %v826, %v875
        %v912 = vsub.f32 %v764, %v878
        %v913 = vsub.f32 %v829, %v878
        %v914 = vsub.f32 %v767, %v881
        %v915 = vsub.f32 %v832, %v881
        %v916 = vsub.f32 %v770, %v884
        %v917 = vsub.f32 %v835, %v884
        %v918 = vsub.f32 %v773, %v887
        %v919 = vsub.f32 %v838, %v887
        %v920 = vmul.f32 %v888, 1.442695
        %v921 = vpow.pop %v920
        %v922 = vmul.f32 %v889, 1.442695
        %v923 = vpow.pop %v922
        %v924 = vmul.f32 %v890, 1.442695
        %v925 = vpow.pop %v924
        %v926 = vmul.f32 %v891, 1.442695
        %v927 = vpow.pop %v926
        %v928 = vmul.f32 %v892, 1.442695
        %v929 = vpow.pop %v928
        %v930 = vmul.f32 %v893, 1.442695
        %v931 = vpow.pop %v930
        %v932 = vmul.f32 %v894, 1.442695
        %v933 = vpow.pop %v932
        %v934 = vmul.f32 %v895, 1.442695
        %v935 = vpow.pop %v934
        %v936 = vmul.f32 %v896, 1.442695
        %v937 = vpow.pop %v936
        %v938 = vmul.f32 %v897, 1.442695
        %v939 = vpow.pop %v938
        %v940 = vmul.f32 %v898, 1.442695
        %v941 = vpow.pop %v940
        %v942 = vmul.f32 %v899, 1.442695
        %v943 = vpow.pop %v942
        %v944 = vmul.f32 %v900, 1.442695
        %v945 = vpow.pop %v944
        %v946 = vmul.f32 %v901, 1.442695
        %v947 = vpow.pop %v946
        %v948 = vmul.f32 %v902, 1.442695
        %v949 = vpow.pop %v948
        %v950 = vmul.f32 %v903, 1.442695
        %v951 = vpow.pop %v950
        %v952 = vmul.f32 %v904, 1.442695
        %v953 = vpow.pop %v952
        %v954 = vmul.f32 %v905, 1.442695
        %v955 = vpow.pop %v954
        %v956 = vmul.f32 %v906, 1.442695
        %v957 = vpow.pop %v956
        %v958 = vmul.f32 %v907, 1.442695
        %v959 = vpow.pop %v958
        %v960 = vmul.f32 %v908, 1.442695
        %v961 = vpow.pop %v960
        %v962 = vmul.f32 %v909, 1.442695
        %v963 = vpow.pop %v962
        %v964 = vmul.f32 %v910, 1.442695
        %v965 = vpow.pop %v964
        %v966 = vmul.f32 %v911, 1.442695
        %v967 = vpow.pop %v966
        %v968 = vmul.f32 %v912, 1.442695
        %v969 = vpow.pop %v968
        %v970 = vmul.f32 %v913, 1.442695
        %v971 = vpow.pop %v970
        %v972 = vmul.f32 %v914, 1.442695
        %v973 = vpow.pop %v972
        %v974 = vmul.f32 %v915, 1.442695
        %v975 = vpow.pop %v974
        %v976 = vmul.f32 %v916, 1.442695
        %v977 = vpow.pop %v976
        %v978 = vmul.f32 %v917, 1.442695
        %v979 = vpow.pop %v978
        %v980 = vmul.f32 %v918, 1.442695
        %v981 = vpow.pop %v980
        %v982 = vmul.f32 %v919, 1.442695
        %v983 = vpow.pop %v982
        %v984 = vadd.f32 %v921, %v923
        %985 = vadd.xlane.f32.xlu0 %v984
        %v986 = vpop.xlane.xlu0 %985
        %v987 = vadd.f32 %v925, %v927
        %988 = vadd.xlane.f32.xlu0 %v987
        %v989 = vpop.xlane.xlu0 %988
        %v990 = vadd.f32 %v929, %v931
        %991 = vadd.xlane.f32.xlu0 %v990
        %v992 = vpop.xlane.xlu0 %991
        %v993 = vadd.f32 %v933, %v935
        %994 = vadd.xlane.f32.xlu0 %v993
        %v995 = vpop.xlane.xlu0 %994
        %v996 = vadd.f32 %v937, %v939
        %997 = vadd.xlane.f32.xlu0 %v996
        %v998 = vpop.xlane.xlu0 %997
        %v999 = vadd.f32 %v941, %v943
        %1000 = vadd.xlane.f32.xlu0 %v999
        %v1001 = vpop.xlane.xlu0 %1000
        %v1002 = vadd.f32 %v945, %v947
        %1003 = vadd.xlane.f32.xlu0 %v1002
        %v1004 = vpop.xlane.xlu0 %1003
        %v1005 = vadd.f32 %v949, %v951
        %1006 = vadd.xlane.f32.xlu0 %v1005
        %v1007 = vpop.xlane.xlu0 %1006
        %v1008 = vadd.f32 %v953, %v955
        %1009 = vadd.xlane.f32.xlu0 %v1008
        %v1010 = vpop.xlane.xlu0 %1009
        %v1011 = vadd.f32 %v957, %v959
        %1012 = vadd.xlane.f32.xlu0 %v1011
        %v1013 = vpop.xlane.xlu0 %1012
        %v1014 = vadd.f32 %v961, %v963
        %1015 = vadd.xlane.f32.xlu0 %v1014
        %v1016 = vpop.xlane.xlu0 %1015
        %v1017 = vadd.f32 %v965, %v967
        %1018 = vadd.xlane.f32.xlu0 %v1017
        %v1019 = vpop.xlane.xlu0 %1018
        %v1020 = vadd.f32 %v969, %v971
        %1021 = vadd.xlane.f32.xlu0 %v1020
        %v1022 = vpop.xlane.xlu0 %1021
        %v1023 = vadd.f32 %v973, %v975
        %1024 = vadd.xlane.f32.xlu0 %v1023
        %v1025 = vpop.xlane.xlu0 %1024
        %v1026 = vadd.f32 %v977, %v979
        %1027 = vadd.xlane.f32.xlu0 %v1026
        %v1028 = vpop.xlane.xlu0 %1027
        %v1029 = vadd.f32 %v981, %v983
        %1030 = vadd.xlane.f32.xlu0 %v1029
        %v1031 = vpop.xlane.xlu0 %1030
        %v1032 = vrcp.pop %v986
        %v1033 = vmul.f32 %v986, %v1032
        %v1034 = vsub.f32 1.0, %v1033
        %v1035 = vmul.f32 %v1032, %v1034
        %v1036 = vadd.f32 %v1032, %v1035
        %vm1037 = vweird.f32 %v986
        %vm1038 = vweird.f32 %v1032
        %vm1039 = vmor %vm1037, %vm1038
        %v1040 = vsel %vm1039, %v1032, %v1036
        %v1041 = vand.u32 2147483647, %v986
        %vm1042 = vcmp.eq.f32.partialorder %v1041, 8.507059e+37
        %v1043 = vand.u32 %v986, 2147483648
        %v1044 = vor.u32 1.1754944e-38, %v1043
        %v1045 = vsel %vm1042, %v1044, %v1040
        %v1046 = vrcp.pop %v989
        %v1047 = vmul.f32 %v989, %v1046
        %v1048 = vsub.f32 1.0, %v1047
        %v1049 = vmul.f32 %v1046, %v1048
        %v1050 = vadd.f32 %v1046, %v1049
        %vm1051 = vweird.f32 %v989
        %vm1052 = vweird.f32 %v1046
        %vm1053 = vmor %vm1051, %vm1052
        %v1054 = vsel %vm1053, %v1046, %v1050
        %v1055 = vand.u32 2147483647, %v989
        %vm1056 = vcmp.eq.f32.partialorder %v1055, 8.507059e+37
        %v1057 = vand.u32 %v989, 2147483648
        %v1058 = vor.u32 1.1754944e-38, %v1057
        %v1059 = vsel %vm1056, %v1058, %v1054
        %v1060 = vrcp.pop %v992
        %v1061 = vmul.f32 %v992, %v1060
        %v1062 = vsub.f32 1.0, %v1061
        %v1063 = vmul.f32 %v1060, %v1062
        %v1064 = vadd.f32 %v1060, %v1063
        %vm1065 = vweird.f32 %v992
        %vm1066 = vweird.f32 %v1060
        %vm1067 = vmor %vm1065, %vm1066
        %v1068 = vsel %vm1067, %v1060, %v1064
        %v1069 = vand.u32 2147483647, %v992
        %vm1070 = vcmp.eq.f32.partialorder %v1069, 8.507059e+37
        %v1071 = vand.u32 %v992, 2147483648
        %v1072 = vor.u32 1.1754944e-38, %v1071
        %v1073 = vsel %vm1070, %v1072, %v1068
        %v1074 = vrcp.pop %v995
        %v1075 = vmul.f32 %v995, %v1074
        %v1076 = vsub.f32 1.0, %v1075
        %v1077 = vmul.f32 %v1074, %v1076
        %v1078 = vadd.f32 %v1074, %v1077
        %vm1079 = vweird.f32 %v995
        %vm1080 = vweird.f32 %v1074
        %vm1081 = vmor %vm1079, %vm1080
        %v1082 = vsel %vm1081, %v1074, %v1078
        %v1083 = vand.u32 2147483647, %v995
        %vm1084 = vcmp.eq.f32.partialorder %v1083, 8.507059e+37
        %v1085 = vand.u32 %v995, 2147483648
        %v1086 = vor.u32 1.1754944e-38, %v1085
        %v1087 = vsel %vm1084, %v1086, %v1082
        %v1088 = vrcp.pop %v998
        %v1089 = vmul.f32 %v998, %v1088
        %v1090 = vsub.f32 1.0, %v1089
        %v1091 = vmul.f32 %v1088, %v1090
        %v1092 = vadd.f32 %v1088, %v1091
        %vm1093 = vweird.f32 %v998
        %vm1094 = vweird.f32 %v1088
        %vm1095 = vmor %vm1093, %vm1094
        %v1096 = vsel %vm1095, %v1088, %v1092
        %v1097 = vand.u32 2147483647, %v998
        %vm1098 = vcmp.eq.f32.partialorder %v1097, 8.507059e+37
        %v1099 = vand.u32 %v998, 2147483648
        %v1100 = vor.u32 1.1754944e-38, %v1099
        %v1101 = vsel %vm1098, %v1100, %v1096
        %v1102 = vrcp.pop %v1001
        %v1103 = vmul.f32 %v1001, %v1102
        %v1104 = vsub.f32 1.0, %v1103
        %v1105 = vmul.f32 %v1102, %v1104
        %v1106 = vadd.f32 %v1102, %v1105
        %vm1107 = vweird.f32 %v1001
        %vm1108 = vweird.f32 %v1102
        %vm1109 = vmor %vm1107, %vm1108
        %v1110 = vsel %vm1109, %v1102, %v1106
        %v1111 = vand.u32 2147483647, %v1001
        %vm1112 = vcmp.eq.f32.partialorder %v1111, 8.507059e+37
        %v1113 = vand.u32 %v1001, 2147483648
        %v1114 = vor.u32 1.1754944e-38, %v1113
        %v1115 = vsel %vm1112, %v1114, %v1110
        %v1116 = vrcp.pop %v1004
        %v1117 = vmul.f32 %v1004, %v1116
        %v1118 = vsub.f32 1.0, %v1117
        %v1119 = vmul.f32 %v1116, %v1118
        %v1120 = vadd.f32 %v1116, %v1119
        %vm1121 = vweird.f32 %v1004
        %vm1122 = vweird.f32 %v1116
        %vm1123 = vmor %vm1121, %vm1122
        %v1124 = vsel %vm1123, %v1116, %v1120
        %v1125 = vand.u32 2147483647, %v1004
        %vm1126 = vcmp.eq.f32.partialorder %v1125, 8.507059e+37
        %v1127 = vand.u32 %v1004, 2147483648
        %v1128 = vor.u32 1.1754944e-38, %v1127
        %v1129 = vsel %vm1126, %v1128, %v1124
        %v1130 = vrcp.pop %v1007
        %v1131 = vmul.f32 %v1007, %v1130
        %v1132 = vsub.f32 1.0, %v1131
        %v1133 = vmul.f32 %v1130, %v1132
        %v1134 = vadd.f32 %v1130, %v1133
        %vm1135 = vweird.f32 %v1007
        %vm1136 = vweird.f32 %v1130
        %vm1137 = vmor %vm1135, %vm1136
        %v1138 = vsel %vm1137, %v1130, %v1134
        %v1139 = vand.u32 2147483647, %v1007
        %vm1140 = vcmp.eq.f32.partialorder %v1139, 8.507059e+37
        %v1141 = vand.u32 %v1007, 2147483648
        %v1142 = vor.u32 1.1754944e-38, %v1141
        %v1143 = vsel %vm1140, %v1142, %v1138
        %v1144 = vrcp.pop %v1010
        %v1145 = vmul.f32 %v1010, %v1144
        %v1146 = vsub.f32 1.0, %v1145
        %v1147 = vmul.f32 %v1144, %v1146
        %v1148 = vadd.f32 %v1144, %v1147
        %vm1149 = vweird.f32 %v1010
        %vm1150 = vweird.f32 %v1144
        %vm1151 = vmor %vm1149, %vm1150
        %v1152 = vsel %vm1151, %v1144, %v1148
        %v1153 = vand.u32 2147483647, %v1010
        %vm1154 = vcmp.eq.f32.partialorder %v1153, 8.507059e+37
        %v1155 = vand.u32 %v1010, 2147483648
        %v1156 = vor.u32 1.1754944e-38, %v1155
        %v1157 = vsel %vm1154, %v1156, %v1152
        %v1158 = vrcp.pop %v1013
        %v1159 = vmul.f32 %v1013, %v1158
        %v1160 = vsub.f32 1.0, %v1159
        %v1161 = vmul.f32 %v1158, %v1160
        %v1162 = vadd.f32 %v1158, %v1161
        %vm1163 = vweird.f32 %v1013
        %vm1164 = vweird.f32 %v1158
        %vm1165 = vmor %vm1163, %vm1164
        %v1166 = vsel %vm1165, %v1158, %v1162
        %v1167 = vand.u32 2147483647, %v1013
        %vm1168 = vcmp.eq.f32.partialorder %v1167, 8.507059e+37
        %v1169 = vand.u32 %v1013, 2147483648
        %v1170 = vor.u32 1.1754944e-38, %v1169
        %v1171 = vsel %vm1168, %v1170, %v1166
        %v1172 = vrcp.pop %v1016
        %v1173 = vmul.f32 %v1016, %v1172
        %v1174 = vsub.f32 1.0, %v1173
        %v1175 = vmul.f32 %v1172, %v1174
        %v1176 = vadd.f32 %v1172, %v1175
        %vm1177 = vweird.f32 %v1016
        %vm1178 = vweird.f32 %v1172
        %vm1179 = vmor %vm1177, %vm1178
        %v1180 = vsel %vm1179, %v1172, %v1176
        %v1181 = vand.u32 2147483647, %v1016
        %vm1182 = vcmp.eq.f32.partialorder %v1181, 8.507059e+37
        %v1183 = vand.u32 %v1016, 2147483648
        %v1184 = vor.u32 1.1754944e-38, %v1183
        %v1185 = vsel %vm1182, %v1184, %v1180
        %v1186 = vrcp.pop %v1019
        %v1187 = vmul.f32 %v1019, %v1186
        %v1188 = vsub.f32 1.0, %v1187
        %v1189 = vmul.f32 %v1186, %v1188
        %v1190 = vadd.f32 %v1186, %v1189
        %vm1191 = vweird.f32 %v1019
        %vm1192 = vweird.f32 %v1186
        %vm1193 = vmor %vm1191, %vm1192
        %v1194 = vsel %vm1193, %v1186, %v1190
        %v1195 = vand.u32 2147483647, %v1019
        %vm1196 = vcmp.eq.f32.partialorder %v1195, 8.507059e+37
        %v1197 = vand.u32 %v1019, 2147483648
        %v1198 = vor.u32 1.1754944e-38, %v1197
        %v1199 = vsel %vm1196, %v1198, %v1194
        %v1200 = vrcp.pop %v1022
        %v1201 = vmul.f32 %v1022, %v1200
        %v1202 = vsub.f32 1.0, %v1201
        %v1203 = vmul.f32 %v1200, %v1202
        %v1204 = vadd.f32 %v1200, %v1203
        %vm1205 = vweird.f32 %v1022
        %vm1206 = vweird.f32 %v1200
        %vm1207 = vmor %vm1205, %vm1206
        %v1208 = vsel %vm1207, %v1200, %v1204
        %v1209 = vand.u32 2147483647, %v1022
        %vm1210 = vcmp.eq.f32.partialorder %v1209, 8.507059e+37
        %v1211 = vand.u32 %v1022, 2147483648
        %v1212 = vor.u32 1.1754944e-38, %v1211
        %v1213 = vsel %vm1210, %v1212, %v1208
        %v1214 = vrcp.pop %v1025
        %v1215 = vmul.f32 %v1025, %v1214
        %v1216 = vsub.f32 1.0, %v1215
        %v1217 = vmul.f32 %v1214, %v1216
        %v1218 = vadd.f32 %v1214, %v1217
        %vm1219 = vweird.f32 %v1025
        %vm1220 = vweird.f32 %v1214
        %vm1221 = vmor %vm1219, %vm1220
        %v1222 = vsel %vm1221, %v1214, %v1218
        %v1223 = vand.u32 2147483647, %v1025
        %vm1224 = vcmp.eq.f32.partialorder %v1223, 8.507059e+37
        %v1225 = vand.u32 %v1025, 2147483648
        %v1226 = vor.u32 1.1754944e-38, %v1225
        %v1227 = vsel %vm1224, %v1226, %v1222
        %v1228 = vrcp.pop %v1028
        %v1229 = vmul.f32 %v1028, %v1228
        %v1230 = vsub.f32 1.0, %v1229
        %v1231 = vmul.f32 %v1228, %v1230
        %v1232 = vadd.f32 %v1228, %v1231
        %vm1233 = vweird.f32 %v1028
        %vm1234 = vweird.f32 %v1228
        %vm1235 = vmor %vm1233, %vm1234
        %v1236 = vsel %vm1235, %v1228, %v1232
        %v1237 = vand.u32 2147483647, %v1028
        %vm1238 = vcmp.eq.f32.partialorder %v1237, 8.507059e+37
        %v1239 = vand.u32 %v1028, 2147483648
        %v1240 = vor.u32 1.1754944e-38, %v1239
        %v1241 = vsel %vm1238, %v1240, %v1236
        %v1242 = vrcp.pop %v1031
        %v1243 = vmul.f32 %v1031, %v1242
        %v1244 = vsub.f32 1.0, %v1243
        %v1245 = vmul.f32 %v1242, %v1244
        %v1246 = vadd.f32 %v1242, %v1245
        %vm1247 = vweird.f32 %v1031
        %vm1248 = vweird.f32 %v1242
        %vm1249 = vmor %vm1247, %vm1248
        %v1250 = vsel %vm1249, %v1242, %v1246
        %v1251 = vand.u32 2147483647, %v1031
        %vm1252 = vcmp.eq.f32.partialorder %v1251, 8.507059e+37
        %v1253 = vand.u32 %v1031, 2147483648
        %v1254 = vor.u32 1.1754944e-38, %v1253
        %v1255 = vsel %vm1252, %v1254, %v1250
        %v1256 = vmul.f32 %v921, %v1045
        %v1257 = vmul.f32 %v923, %v1045
        %v1258 = vmul.f32 %v925, %v1059
        %v1259 = vmul.f32 %v927, %v1059
        %v1260 = vmul.f32 %v929, %v1073
        %v1261 = vmul.f32 %v931, %v1073
        %v1262 = vmul.f32 %v933, %v1087
        %v1263 = vmul.f32 %v935, %v1087
        %v1264 = vmul.f32 %v937, %v1101
        %v1265 = vmul.f32 %v939, %v1101
        %v1266 = vmul.f32 %v941, %v1115
        %v1267 = vmul.f32 %v943, %v1115
        %v1268 = vmul.f32 %v945, %v1129
        %v1269 = vmul.f32 %v947, %v1129
        %v1270 = vmul.f32 %v949, %v1143
        %v1271 = vmul.f32 %v951, %v1143
        %v1272 = vmul.f32 %v953, %v1157
        %v1273 = vmul.f32 %v955, %v1157
        %v1274 = vmul.f32 %v957, %v1171
        %v1275 = vmul.f32 %v959, %v1171
        %v1276 = vmul.f32 %v961, %v1185
        %v1277 = vmul.f32 %v963, %v1185
        %v1278 = vmul.f32 %v965, %v1199
        %v1279 = vmul.f32 %v967, %v1199
        %v1280 = vmul.f32 %v969, %v1213
        %v1281 = vmul.f32 %v971, %v1213
        %v1282 = vmul.f32 %v973, %v1227
        %v1283 = vmul.f32 %v975, %v1227
        %v1284 = vmul.f32 %v977, %v1241
        %v1285 = vmul.f32 %v979, %v1241
        %v1286 = vmul.f32 %v981, %v1255
        %v1287 = vmul.f32 %v983, %v1255
        %v1288 = vmul.f32 %v1256, %v728
        %v1289 = vmul.f32 %v1257, %v793
        %v1290 = vmul.f32 %v1258, %v731
        %v1291 = vmul.f32 %v1259, %v796
        %v1292 = vmul.f32 %v1260, %v734
        %v1293 = vmul.f32 %v1261, %v799
        %v1294 = vmul.f32 %v1262, %v737
        %v1295 = vmul.f32 %v1263, %v802
        %v1296 = vmul.f32 %v1264, %v740
        %v1297 = vmul.f32 %v1265, %v805
        %v1298 = vmul.f32 %v1266, %v743
        %v1299 = vmul.f32 %v1267, %v808
        %v1300 = vmul.f32 %v1268, %v746
        %v1301 = vmul.f32 %v1269, %v811
        %v1302 = vmul.f32 %v1270, %v749
        %v1303 = vmul.f32 %v1271, %v814
        %v1304 = vmul.f32 %v1272, %v752
        %v1305 = vmul.f32 %v1273, %v817
        %v1306 = vmul.f32 %v1274, %v755
        %v1307 = vmul.f32 %v1275, %v820
        %v1308 = vmul.f32 %v1276, %v758
        %v1309 = vmul.f32 %v1277, %v823
        %v1310 = vmul.f32 %v1278, %v761
        %v1311 = vmul.f32 %v1279, %v826
        %v1312 = vmul.f32 %v1280, %v764
        %v1313 = vmul.f32 %v1281, %v829
        %v1314 = vmul.f32 %v1282, %v767
        %v1315 = vmul.f32 %v1283, %v832
        %v1316 = vmul.f32 %v1284, %v770
        %v1317 = vmul.f32 %v1285, %v835
        %v1318 = vmul.f32 %v1286, %v773
        %v1319 = vmul.f32 %v1287, %v838
        %v1320 = vadd.f32 %v1288, %v1289
        %1321 = vadd.xlane.f32.xlu0 %v1320
        %v1322 = vpop.xlane.xlu0 %1321
        %v1323 = vadd.f32 %v1290, %v1291
        %1324 = vadd.xlane.f32.xlu0 %v1323
        %v1325 = vpop.xlane.xlu0 %1324
        %v1326 = vadd.f32 %v1292, %v1293
        %1327 = vadd.xlane.f32.xlu0 %v1326
        %v1328 = vpop.xlane.xlu0 %1327
        %v1329 = vadd.f32 %v1294, %v1295
        %1330 = vadd.xlane.f32.xlu0 %v1329
        %v1331 = vpop.xlane.xlu0 %1330
        %v1332 = vadd.f32 %v1296, %v1297
        %1333 = vadd.xlane.f32.xlu0 %v1332
        %v1334 = vpop.xlane.xlu0 %1333
        %v1335 = vadd.f32 %v1298, %v1299
        %1336 = vadd.xlane.f32.xlu0 %v1335
        %v1337 = vpop.xlane.xlu0 %1336
        %v1338 = vadd.f32 %v1300, %v1301
        %1339 = vadd.xlane.f32.xlu0 %v1338
        %v1340 = vpop.xlane.xlu0 %1339
        %v1341 = vadd.f32 %v1302, %v1303
        %1342 = vadd.xlane.f32.xlu0 %v1341
        %v1343 = vpop.xlane.xlu0 %1342
        %v1344 = vadd.f32 %v1304, %v1305
        %1345 = vadd.xlane.f32.xlu0 %v1344
        %v1346 = vpop.xlane.xlu0 %1345
        %v1347 = vadd.f32 %v1306, %v1307
        %1348 = vadd.xlane.f32.xlu0 %v1347
        %v1349 = vpop.xlane.xlu0 %1348
        %v1350 = vadd.f32 %v1308, %v1309
        %1351 = vadd.xlane.f32.xlu0 %v1350
        %v1352 = vpop.xlane.xlu0 %1351
        %v1353 = vadd.f32 %v1310, %v1311
        %1354 = vadd.xlane.f32.xlu0 %v1353
        %v1355 = vpop.xlane.xlu0 %1354
        %v1356 = vadd.f32 %v1312, %v1313
        %1357 = vadd.xlane.f32.xlu0 %v1356
        %v1358 = vpop.xlane.xlu0 %1357
        %v1359 = vadd.f32 %v1314, %v1315
        %1360 = vadd.xlane.f32.xlu0 %v1359
        %v1361 = vpop.xlane.xlu0 %1360
        %v1362 = vadd.f32 %v1316, %v1317
        %1363 = vadd.xlane.f32.xlu0 %v1362
        %v1364 = vpop.xlane.xlu0 %1363
        %v1365 = vadd.f32 %v1318, %v1319
        %1366 = vadd.xlane.f32.xlu0 %v1365
        %v1367 = vpop.xlane.xlu0 %1366
        %v1368 = vlog2.pop %v986
        %v1369 = vmul.f32 %v1368, 0.6931472
        %v1370 = vlog2.pop %v989
        %v1371 = vmul.f32 %v1370, 0.6931472
        %v1372 = vlog2.pop %v992
        %v1373 = vmul.f32 %v1372, 0.6931472
        %v1374 = vlog2.pop %v995
        %v1375 = vmul.f32 %v1374, 0.6931472
        %v1376 = vlog2.pop %v998
        %v1377 = vmul.f32 %v1376, 0.6931472
        %v1378 = vlog2.pop %v1001
        %v1379 = vmul.f32 %v1378, 0.6931472
        %v1380 = vlog2.pop %v1004
        %v1381 = vmul.f32 %v1380, 0.6931472
        %v1382 = vlog2.pop %v1007
        %v1383 = vmul.f32 %v1382, 0.6931472
        %v1384 = vlog2.pop %v1010
        %v1385 = vmul.f32 %v1384, 0.6931472
        %v1386 = vlog2.pop %v1013
        %v1387 = vmul.f32 %v1386, 0.6931472
        %v1388 = vlog2.pop %v1016
        %v1389 = vmul.f32 %v1388, 0.6931472
        %v1390 = vlog2.pop %v1019
        %v1391 = vmul.f32 %v1390, 0.6931472
        %v1392 = vlog2.pop %v1022
        %v1393 = vmul.f32 %v1392, 0.6931472
        %v1394 = vlog2.pop %v1025
        %v1395 = vmul.f32 %v1394, 0.6931472
        %v1396 = vlog2.pop %v1028
        %v1397 = vmul.f32 %v1396, 0.6931472
        %v1398 = vlog2.pop %v1031
        %v1399 = vmul.f32 %v1398, 0.6931472
        %v1400 = vadd.f32 %v842, %v1369
        %v1401 = vadd.f32 %v845, %v1371
        %v1402 = vadd.f32 %v848, %v1373
        %v1403 = vadd.f32 %v851, %v1375
        %v1404 = vadd.f32 %v854, %v1377
        %v1405 = vadd.f32 %v857, %v1379
        %v1406 = vadd.f32 %v860, %v1381
        %v1407 = vadd.f32 %v863, %v1383
        %v1408 = vadd.f32 %v866, %v1385
        %v1409 = vadd.f32 %v869, %v1387
        %v1410 = vadd.f32 %v872, %v1389
        %v1411 = vadd.f32 %v875, %v1391
        %v1412 = vadd.f32 %v878, %v1393
        %v1413 = vadd.f32 %v881, %v1395
        %v1414 = vadd.f32 %v884, %v1397
        %v1415 = vadd.f32 %v887, %v1399
        %v1416 = vsub.f32 %v1400, %v1322
        %v1417 = vsub.f32 %v1401, %v1325
        %v1418 = vsub.f32 %v1402, %v1328
        %v1419 = vsub.f32 %v1403, %v1331
        %v1420 = vsub.f32 %v1404, %v1334
        %v1421 = vsub.f32 %v1405, %v1337
        %v1422 = vsub.f32 %v1406, %v1340
        %v1423 = vsub.f32 %v1407, %v1343
        %v1424 = vsub.f32 %v1408, %v1346
        %v1425 = vsub.f32 %v1409, %v1349
        %v1426 = vsub.f32 %v1410, %v1352
        %v1427 = vsub.f32 %v1411, %v1355
        %v1428 = vsub.f32 %v1412, %v1358
        %v1429 = vsub.f32 %v1413, %v1361
        %v1430 = vsub.f32 %v1414, %v1364
        %v1431 = vsub.f32 %v1415, %v1367
        %v1432 = vadd.f32 %v1416, %v1417
        %v1433 = vadd.f32 %v1432, %v1418
        %v1434 = vadd.f32 %v1433, %v1419
        %v1435 = vadd.f32 %v1434, %v1420
        %v1436 = vadd.f32 %v1435, %v1421
        %v1437 = vadd.f32 %v1436, %v1422
        %v1438 = vadd.f32 %v1437, %v1423
        %v1439 = vadd.f32 %v1438, %v1424
        %v1440 = vadd.f32 %v1439, %v1425
        %v1441 = vadd.f32 %v1440, %v1426
        %v1442 = vadd.f32 %v1441, %v1427
        %v1443 = vadd.f32 %v1442, %v1428
        %v1444 = vadd.f32 %v1443, %v1429
        %v1445 = vadd.f32 %v1444, %v1430
        %v1446 = vadd.f32 %v1445, %v1431
        %v1447 = vrot.slane %v1446, 4
        %v1448 = vadd.f32 %v1446, %v1447
        %v1449 = vrot.slane %v1448, 2
        %v1450 = vadd.f32 %v1448, %v1449
        %v1451 = vrot.slane %v1450, 1
        %v1452 = vadd.f32 %v1450, %v1451
        %v1453 = vlaneseq
        %v1454 = vshrl.u32 %v1453, 7
        %vm1455 = vcmp.eq.s32.totalorder %v1454, 0
        %v1456 = vsel %vm1455, 1.0, 0.0
        %1457 = vmatpush.msra.mxu0 %v1286
        %1458 = vmatpush.msra.mxu0 %v1284
        %1459 = vmatpush.msra.mxu0 %v1282
        %1460 = vmatpush.msra.mxu0 %v1280
        %1461 = vmatpush.msra.mxu0 %v1278
        %1462 = vmatpush.msra.mxu0 %v1276
        %1463 = vmatpush.msra.mxu0 %v1274
        %1464 = vmatpush.msra.mxu0 %v1272
        %1465 = vmatpush.msra.mxu0 %v1270
        %1466 = vmatpush.msra.mxu0 %v1268
        %1467 = vmatpush.msra.mxu0 %v1266
        %1468 = vmatpush.msra.mxu0 %v1264
        %1469 = vmatpush.msra.mxu0 %v1262
        %1470 = vmatpush.msra.mxu0 %v1260
        %1471 = vmatpush.msra.mxu0 %v1258
        %1472 = vmatpush.msra.mxu0 %v1256
        %1473 = vmatmul.f32.gmra.mxu0 %v1456
        %v1474 = vpop.f32.mrf.mxu0
        %v1475 = vadd.f32 0.0, %v1474
        %1476 = vdwg.mxu0
        %1477 = vmatpush.msra.mxu0 %v1287
        %1478 = vmatpush.msra.mxu0 %v1285
        %1479 = vmatpush.msra.mxu0 %v1283
        %1480 = vmatpush.msra.mxu0 %v1281
        %1481 = vmatpush.msra.mxu0 %v1279
        %1482 = vmatpush.msra.mxu0 %v1277
        %1483 = vmatpush.msra.mxu0 %v1275
        %1484 = vmatpush.msra.mxu0 %v1273
        %1485 = vmatpush.msra.mxu0 %v1271
        %1486 = vmatpush.msra.mxu0 %v1269
        %1487 = vmatpush.msra.mxu0 %v1267
        %1488 = vmatpush.msra.mxu0 %v1265
        %1489 = vmatpush.msra.mxu0 %v1263
        %1490 = vmatpush.msra.mxu0 %v1261
        %1491 = vmatpush.msra.mxu0 %v1259
        %1492 = vmatpush.msra.mxu0 %v1257
        %1493 = vmatmul.f32.gmra.mxu0 %v1456
        %v1494 = vpop.f32.mrf.mxu0
        %v1495 = vadd.f32 0.0, %v1494
        %1496 = vdwg.mxu0
        %1497 = vst [vmem:[%s303] sm:$0xff] %v1475
        %1498 = vst [vmem:[%s303 + $0x8] sm:$0xff] %v1495
        %v1499 = vlaneseq
        %v1500 = vand.u32 %v1499, 127
        %vm1501 = vcmp.eq.s32.totalorder %v1500, 0
        %vm1502 = vmand %vm1455, %vm1501
        %v1503 = vsel %vm1502, %v659, 0.0
        %vm1504 = vcmp.eq.s32.totalorder %v1500, 1
        %vm1505 = vmand %vm1455, %vm1504
        %v1506 = vsel %vm1505, %v1452, 0.0
        %v1507 = vadd.f32 %v1503, %v1506
        %1508 = vst [vmem:[%s310] sm:$0xff] %v1507
        %s1509 = sand.u32 %s127, 1
        %s1510 = scalar_lea.sflag [#allocation3], %s1509
        %s1511 = sand.u32 %s127, 1
        %s1512 = smul.addr %s1511, 8
        %s1513 = scalar_lea.vmem [#allocation2], %s1512
        %s1514 = smul.u32 16, %s25
        %p1515 = scmp.lt.s32.totalorder %s1514, 63
        %s1516 = scalar_select %p1515, %s1514, 63
        %s1517 = smul.addr %s1516, 8
        %s1518 = scalar_lea.vmem %s5, %s1517
        %s1519 = sand.u32 %s25, 1
        %s1520 = scalar_lea.sflag [#allocation5], %s1519
        %s1521 = sand.u32 %s179, 1
        %s1522 = smul.addr %s1521, 16
        %s1523 = scalar_lea.vmem [#allocation4], %s1522
        %s1524 = sand.u32 %s25, 1
        %s1525 = scalar_lea.sflag [#allocation5], %s1524
        %s1526 = sand.u32 %s205, 1
        %s1527 = smul.addr %s1526, 8
        %s1528 = scalar_lea.vmem [#allocation6], %s1527
        // Predicated region
        $region37: #{tpu_custom_call.1} parent=35 // pred_check
          %p1529 = pneg %p137
        $region38: #{tpu_custom_call.1} parent=35 // pred_check_branch
          %1531 = sbr.rel (%p1529) target = $region40
        $region39: #{tpu_custom_call.1} parent=35 // pred_region
          %1533 = vsyncadd %s1510, 0
          %s1534 = smul.addr %s25, 8
          %s1535 = scalar_lea.hbm %s4, %s1534
          %s1537 = sshll.u32 %s1513, 4
          %s1538 = int_to_ptr.vmem [resolvable:$true] %s1537
          %s1539 = sshll.u32 %s1535, 4
          %s1540 = int_to_ptr.hbm [resolvable:$true] %s1539
          %1542 = dma.vmem_to_hbm [thread:$0]  %s1538, 128, %s1540, %s1510
        $region40: #{tpu_custom_call.1} parent=35 // pred_fallthru
          _
        // Predicated region
        $region41: #{tpu_custom_call.1} parent=35 // pred_check
          %p1543 = pneg %p163
        $region42: #{tpu_custom_call.1} parent=35 // pred_check_branch
          %1545 = sbr.rel (%p1543) target = $region44
        $region43: #{tpu_custom_call.1} parent=35 // pred_region
          %s1546 = smul.u32 16, %s25
        $region44: #{tpu_custom_call.1} parent=35 // pred_fallthru
          _
        // Predicated region
        $region45: #{tpu_custom_call.1} parent=35 // pred_check
          %p1547 = pneg %p189
        $region46: #{tpu_custom_call.1} parent=35 // pred_check_branch
          %1549 = sbr.rel (%p1547) target = $region48
        $region47: #{tpu_custom_call.1} parent=35 // pred_region
          %1551 = vsyncadd %s1520, 0
          %s1552 = smul.addr %s25, 2
          %s1553 = smul.addr %s1552, 8
          %s1554 = scalar_lea.hbm %s6, %s1553
          %s1556 = sshll.u32 %s1523, 4
          %s1557 = int_to_ptr.vmem [resolvable:$true] %s1556
          %s1558 = sshll.u32 %s1554, 4
          %s1559 = int_to_ptr.hbm [resolvable:$true] %s1558
          %1561 = dma.vmem_to_hbm [thread:$0]  %s1557, 256, %s1559, %s1520
        $region48: #{tpu_custom_call.1} parent=35 // pred_fallthru
          _
        // Predicated region
        $region49: #{tpu_custom_call.1} parent=35 // pred_check
          %p1562 = pneg %p215
        $region50: #{tpu_custom_call.1} parent=35 // pred_check_branch
          %1564 = sbr.rel (%p1562) target = $region52
        $region51: #{tpu_custom_call.1} parent=35 // pred_region
          %1566 = vsyncadd %s1525, 0
          %s1567 = smul.addr %s25, 8
          %s1568 = scalar_lea.hbm %s7, %s1567
          %s1570 = sshll.u32 %s1528, 4
          %s1571 = int_to_ptr.vmem [resolvable:$true] %s1570
          %s1572 = sshll.u32 %s1568, 4
          %s1573 = int_to_ptr.hbm [resolvable:$true] %s1572
          %1575 = dma.vmem_to_hbm [thread:$0]  %s1571, 128, %s1573, %s1525
        $region52: #{tpu_custom_call.1} parent=35 // pred_fallthru
          _
      $region36: #{tpu_custom_call.1} parent=5 // pred_fallthru
        _
      %p1576 = scmp.le.s32.totalorder 2, %s20
      // Predicated region
      $region53: #{tpu_custom_call.1} parent=5 // pred_check
        %p1577 = pneg %p1576
      $region54: #{tpu_custom_call.1} parent=5 // pred_check_branch
        %1579 = sbr.rel (%p1577) target = $region56
      $region55: #{tpu_custom_call.1} parent=5 // pred_region
        %s1580 = ssub.s32 %s20, 2
        // Predicated region
        $region57: #{tpu_custom_call.1} parent=55 // pred_check
          %p1581 = pneg %p143
        $region58: #{tpu_custom_call.1} parent=55 // pred_check_branch
          %1583 = sbr.rel (%p1581) target = $region60
        $region59: #{tpu_custom_call.1} parent=55 // pred_region
          %s1584 = sand.u32 %s128, 1
          %s1585 = scalar_lea.sflag [#allocation3], %s1584
          %s1586 = sand.u32 %s128, 1
          %s1587 = smul.addr %s1586, 8
          %s1588 = scalar_lea.vmem [#allocation2], %s1587
          %1590 = dma.done %s1585, 128
        $region60: #{tpu_custom_call.1} parent=55 // pred_fallthru
          _
        // Predicated region
        $region61: #{tpu_custom_call.1} parent=55 // pred_check
          %p1591 = pneg %p169
        $region62: #{tpu_custom_call.1} parent=55 // pred_check_branch
          %1593 = sbr.rel (%p1591) target = $region64
        $region63: #{tpu_custom_call.1} parent=55 // pred_region
          %s1594 = smul.u32 16, %s26
          %p1595 = scmp.lt.s32.totalorder %s1594, 63
          %s1596 = scalar_select %p1595, %s1594, 63
          %s1597 = smul.addr %s1596, 8
          %s1598 = scalar_lea.vmem %s5, %s1597
        $region64: #{tpu_custom_call.1} parent=55 // pred_fallthru
          _
        // Predicated region
        $region65: #{tpu_custom_call.1} parent=55 // pred_check
          %p1599 = pneg %p195
        $region66: #{tpu_custom_call.1} parent=55 // pred_check_branch
          %1601 = sbr.rel (%p1599) target = $region68
        $region67: #{tpu_custom_call.1} parent=55 // pred_region
          %s1602 = sand.u32 %s26, 1
          %s1603 = scalar_lea.sflag [#allocation5], %s1602
          %s1604 = sand.u32 %s180, 1
          %s1605 = smul.addr %s1604, 16
          %s1606 = scalar_lea.vmem [#allocation4], %s1605
          %1608 = dma.done %s1603, 256
        $region68: #{tpu_custom_call.1} parent=55 // pred_fallthru
          _
        // Predicated region
        $region69: #{tpu_custom_call.1} parent=55 // pred_check
          %p1609 = pneg %p221
        $region70: #{tpu_custom_call.1} parent=55 // pred_check_branch
          %1611 = sbr.rel (%p1609) target = $region72
        $region71: #{tpu_custom_call.1} parent=55 // pred_region
          %s1612 = sand.u32 %s26, 1
          %s1613 = scalar_lea.sflag [#allocation5], %s1612
          %s1614 = sand.u32 %s206, 1
          %s1615 = smul.addr %s1614, 8
          %s1616 = scalar_lea.vmem [#allocation6], %s1615
          %1618 = dma.done %s1613, 128
        $region72: #{tpu_custom_call.1} parent=55 // pred_fallthru
          _
      $region56: #{tpu_custom_call.1} parent=5 // pred_fallthru
        _
    $region6: #{tpu_custom_call.1} parent=1 // loop_footer
      %s24 = sadd.s32 1, %s20
    $region7: #{tpu_custom_call.1} parent=1 // loop_footer_branch
      %19 = sbr.rel target = $region3
    $region8: #{tpu_custom_call.1} parent=1 // loop_exit
      _
    %1619 = vsyncpa [#allocation3], 1
    %s1620 = scalar_lea.sflag [#allocation3], 1
    %1621 = vsyncpa %s1620, 1
    %1622 = vsyncpa [#allocation5], 1
    %s1623 = scalar_lea.sflag [#allocation5], 1
    %1624 = vsyncpa %s1623, 1

</llo_original>
